<compile_context>
chip_gen: v5e
topology: v5e:2x2
jax: 0.10.0
libtpu: 0.0.40
codegen_flags: <defaults>
</compile_context>

<pallas_src>
import functools

import jax
import jax.numpy as jnp
from jax.experimental import pallas as pl
from jax.experimental.pallas import tpu as pltpu


def _round_up(x, m):
    return ((x + m - 1) // m) * m


def _num_tensorcores_per_chip():
    """2 on dual-TensorCore chips (v7x), else 1 (v5e / v6e)."""
    try:
        kind = jax.devices()[0].device_kind.lower()
    except Exception:
        return 1
    return 2 if "v7" in kind else 1


def _pick_block_batch(batch, num_tc):
    """Batch-tile rows per grid step.

    Single-TC chips: one big tile (<= 256 rows) so typical batches run in a
    single grid step.  Dual-TC chips: 128-row tiles so the "parallel" batch
    axis shards across both TensorCores.
    """
    desired = 128 if num_tc >= 2 else 256
    if batch <= desired:
        return batch        # block == full array dim: always a legal block shape
    return desired          # multiple of 8; last block may be partial (masked store)


def decoder_mlp_kernel(n_layers, conditional, *refs):
    """Fused MLP decoder kernel (one batch tile per grid step).

    Ref layout (conditional=True):
        z_ref, c_ref, w0, b0, w1, b1, ..., w_{n-1}, b_{n-1}, out_ref
    Ref layout (conditional=False):
        z_ref, w0, b0, ..., out_ref

    Weights are bf16, pre-transposed to (in, out) and zero-padded to lane-dense
    widths; biases are f32.  Matmuls run bf16 on the MXU with f32 accumulation.
    """
    out_ref = refs[-1]
    if conditional:
        z_ref, c_ref = refs[0], refs[1]
        wb = refs[2:-1]
        # In-kernel lane concat (XLU) replaces both the HBM-level torch.cat and
        # the previous split-W0 double matmul.
        x = jnp.concatenate((z_ref[...], c_ref[...]), axis=-1).astype(jnp.bfloat16)
    else:
        z_ref = refs[0]
        wb = refs[1:-1]
        x = z_ref[...].astype(jnp.bfloat16)   # no-op if the producer is already bf16

    h = None
    for i in range(n_layers):
        w_ref, b_ref = wb[2 * i], wb[2 * i + 1]
        h = jnp.dot(x, w_ref[...], preferred_element_type=jnp.float32) + b_ref[...]
        if i + 1 < n_layers:
            # ReLU on the bf16 copy == f32 ReLU then cast (cast is monotone and
            # preserves 0); only one live copy of h is carried between layers.
            x = jnp.maximum(h.astype(jnp.bfloat16), 0.0)

    out_ref[...] = h.astype(out_ref.dtype)


def make_decoder_params(key, layer_sizes, latent_size, conditional, condition_size):
    """Deterministic synthetic parameters (nn.Linear init, pre-transposed to (in, out))."""
    input_size = latent_size + condition_size if conditional else latent_size
    dims = [input_size] + list(layer_sizes)
    params = []
    for d_in, d_out in zip(dims[:-1], dims[1:]):
        key, kw, kb = jax.random.split(key, 3)
        bound = 1.0 / jnp.sqrt(jnp.float32(d_in))
        w = jax.random.uniform(kw, (d_in, d_out), jnp.float32, -bound, bound)
        b = jax.random.uniform(kb, (1, d_out), jnp.float32, -bound, bound)
        params.append((w, b))
    return params


def prepare_decoder_params(params):
    """Zero-pad widths to multiples of 128, cast weights to bf16, biases to f32.

    Zero padding keeps the math exact: padded hidden columns are 0 (zero weight
    cols + zero bias) and the next layer's padded weight rows are 0.  NOTE: if
    params ever come from a checkpoint / quantizer, the pad regions produced
    here are freshly zeroed, so the invariant holds by construction.

    Returns (flat_inputs, out_dim, out_pad).
    """
    flat = []
    prev_out_pad = None
    for i, (w, b) in enumerate(params):
        d_in, d_out = w.shape
        d_out_pad = _round_up(d_out, 128)
        if i > 0 and prev_out_pad is not None and prev_out_pad != d_in:
            w = jnp.pad(w, ((0, prev_out_pad - d_in), (0, 0)))
        if d_out_pad != d_out:
            w = jnp.pad(w, ((0, 0), (0, d_out_pad - d_out)))
            b = jnp.pad(b, ((0, 0), (0, d_out_pad - d_out)))
        flat.append(w.astype(jnp.bfloat16))
        flat.append(b.astype(jnp.float32))
        prev_out_pad = d_out_pad
    return flat, params[-1][0].shape[1], prev_out_pad


def decoder_forward(z, c, params, conditional=True, block_batch=None):
    """Pallas-backed forward pass equivalent to Decoder.forward(z, c)."""
    n_layers = len(params)
    batch = z.shape[0]
    flat, out_dim, out_pad = prepare_decoder_params(params)

    num_tc = _num_tensorcores_per_chip()
    tm = block_batch if block_batch is not None else _pick_block_batch(batch, num_tc)
    tm = min(tm, batch) if batch < tm else tm
    grid = (pl.cdiv(batch, tm),)

    row_map = lambda i: (i, 0)    # activations / output: tile over batch
    rep_map = lambda i: (0, 0)    # weights / biases: resident across grid steps

    act_inputs = [z] + ([c] if conditional else [])
    act_specs = [pl.BlockSpec((tm, a.shape[-1]), row_map) for a in act_inputs]

    # Advisory cost hint for XLA's scheduler (unpadded math; lane-padded output).
    flops = 2 * batch * sum(w.shape[0] * w.shape[1] for w, _ in params)
    bytes_accessed = sum(int(a.size) * a.dtype.itemsize for a in act_inputs + flat)
    bytes_accessed += batch * out_pad * 4

    kernel = functools.partial(decoder_mlp_kernel, n_layers, conditional)

    def run(weight_pipeline_mode):
        wkw = {} if weight_pipeline_mode is None else {"pipeline_mode": weight_pipeline_mode}
        param_specs = [pl.BlockSpec(p.shape, rep_map, **wkw) for p in flat]
        return pl.pallas_call(
            kernel,
            out_shape=jax.ShapeDtypeStruct((batch, out_pad), jnp.float32),
            grid=grid,
            in_specs=act_specs + param_specs,
            out_specs=pl.BlockSpec((tm, out_pad), row_map),
            compiler_params=pltpu.CompilerParams(
                dimension_semantics=("parallel",)),
            cost_estimate=pl.CostEstimate(
                flops=flops, transcendentals=0, bytes_accessed=bytes_accessed),
        )(*(act_inputs + flat))

    # Constant-index weight/bias blocks don't need double buffering; fall back
    # to the default pipeline mode if this JAX build rejects buffer_count=1.
    weight_mode = pl.Buffered(1) if hasattr(pl, "Buffered") else None
    try:
        out_padded = run(weight_mode)
    except Exception:
        if weight_mode is None:
            raise
        out_padded = run(None)

    return out_padded[:, :out_dim]


def decoder_ref_bf16(z, c, params, conditional=True):
    """Pure-JAX reference mirroring the kernel's bf16-in / f32-accumulate numerics."""
    x = jnp.concatenate((z, c), axis=-1) if conditional else z
    n = len(params)
    for i, (w, b) in enumerate(params):
        x = jnp.dot(x.astype(jnp.bfloat16), w.astype(jnp.bfloat16),
                    preferred_element_type=jnp.float32) + b
        if i + 1 < n:
            x = jnp.maximum(x, 0.0)
    return x


def decoder_ref_f32(z, c, params, conditional=True):
    """Full-precision reference (sanity check)."""
    x = jnp.concatenate((z, c), axis=-1) if conditional else z
    n = len(params)
    for i, (w, b) in enumerate(params):
        x = x @ w + b
        if i + 1 < n:
            x = jnp.maximum(x, 0.0)
    return x


if __name__ == "__main__":
    # Shapes consistent with the module's forward:
    #   z: (B, latent), c: (B, cond), MLP: [latent+cond] -> 64 -> 64 -> 16
    batch = 256            # single 256-row step on v5e/v6e; two 128-row steps on v7x
    latent_size = 32
    condition_size = 32
    layer_sizes = [64, 64, 16]
    conditional = True

    key = jax.random.PRNGKey(0)
    kz, kc, kp = jax.random.split(key, 3)
    z = jax.random.normal(kz, (batch, latent_size), jnp.float32)
    c = jax.random.normal(kc, (batch, condition_size), jnp.float32)
    params = make_decoder_params(kp, layer_sizes, latent_size, conditional, condition_size)

    out = decoder_forward(z, c, params, conditional=conditional)
    out = jax.block_until_ready(out)
    assert out.shape == (batch, layer_sizes[-1]), out.shape

    ref_bf16 = decoder_ref_bf16(z, c, params, conditional=conditional)
    ref_f32 = decoder_ref_f32(z, c, params, conditional=conditional)
    assert jnp.allclose(out, ref_bf16, atol=2e-3, rtol=2e-3), \
        "mismatch vs bf16-matched JAX reference"
    assert jnp.allclose(out, ref_f32, atol=5e-2), \
        "mismatch vs f32 JAX reference"

    print("KERNEL_OK")
</pallas_src>

<mosaic_0001>
module attributes {stable_mosaic.version = 11 : i64} {
  func.func @decoder_mlp_kernel(%arg0: i32, %arg1: memref<256x32xf32, #tpu.memory_space<vmem>>, %arg2: memref<256x32xf32, #tpu.memory_space<vmem>>, %arg3: memref<64x128xbf16, #tpu.memory_space<vmem>>, %arg4: memref<1x128xf32, #tpu.memory_space<vmem>>, %arg5: memref<128x128xbf16, #tpu.memory_space<vmem>>, %arg6: memref<1x128xf32, #tpu.memory_space<vmem>>, %arg7: memref<128x128xbf16, #tpu.memory_space<vmem>>, %arg8: memref<1x128xf32, #tpu.memory_space<vmem>>, %arg9: memref<256x128xf32, #tpu.memory_space<vmem>>) attributes {dimension_semantics = [#tpu.dimension_semantics<parallel>], iteration_bounds = array<i64: 1>, scalar_prefetch = 0 : i64, scratch_operands = 0 : i64, tpu.core_type = #tpu.core_type<tc>, window_params = [{transform_indices = @transform_0, window_bounds = array<i64: 256, 32>}, {transform_indices = @transform_1, window_bounds = array<i64: 256, 32>}, {pipeline_mode = #tpu.pipeline_mode<synchronous>, transform_indices = @transform_2, window_bounds = array<i64: 64, 128>}, {pipeline_mode = #tpu.pipeline_mode<synchronous>, transform_indices = @transform_3, window_bounds = array<i64: 1, 128>}, {pipeline_mode = #tpu.pipeline_mode<synchronous>, transform_indices = @transform_4, window_bounds = array<i64: 128, 128>}, {pipeline_mode = #tpu.pipeline_mode<synchronous>, transform_indices = @transform_5, window_bounds = array<i64: 1, 128>}, {pipeline_mode = #tpu.pipeline_mode<synchronous>, transform_indices = @transform_6, window_bounds = array<i64: 128, 128>}, {pipeline_mode = #tpu.pipeline_mode<synchronous>, transform_indices = @transform_7, window_bounds = array<i64: 1, 128>}, {transform_indices = @transform_8, window_bounds = array<i64: 256, 128>}]} {
    %c0 = arith.constant 0 : index
    %c0_0 = arith.constant 0 : index
    %0 = vector.load %arg1[%c0, %c0_0] : memref<256x32xf32, #tpu.memory_space<vmem>>, vector<256x32xf32>
    %c0_1 = arith.constant 0 : index
    %c0_2 = arith.constant 0 : index
    %1 = vector.load %arg2[%c0_1, %c0_2] : memref<256x32xf32, #tpu.memory_space<vmem>>, vector<256x32xf32>
    %2 = tpu.concatenate %0, %1 in 1 : vector<256x32xf32>, vector<256x32xf32> -> vector<256x64xf32>
    %3 = arith.truncf %2 : vector<256x64xf32> to vector<256x64xbf16>
    %c0_3 = arith.constant 0 : index
    %c0_4 = arith.constant 0 : index
    %4 = vector.load %arg3[%c0_3, %c0_4] : memref<64x128xbf16, #tpu.memory_space<vmem>>, vector<64x128xbf16>
    %cst = arith.constant dense<0.000000e+00> : vector<256x128xf32>
    %5 = tpu.matmul %3, %4, %cst {dimension_numbers = #tpu.dot_dimension_numbers<[1], [0], [0], [1], [0, 0, 1, 1], [], []>} : vector<256x64xbf16>, vector<64x128xbf16>, vector<256x128xf32> -> vector<256x128xf32>
    %c0_5 = arith.constant 0 : index
    %c0_6 = arith.constant 0 : index
    %6 = vector.load %arg4[%c0_5, %c0_6] : memref<1x128xf32, #tpu.memory_space<vmem>>, vector<1x128xf32>
    %7 = vector.broadcast %6 : vector<1x128xf32> to vector<256x128xf32>
    %8 = arith.addf %5, %7 : vector<256x128xf32>
    %9 = arith.truncf %8 : vector<256x128xf32> to vector<256x128xbf16>
    %cst_7 = arith.constant 0.000000e+00 : bf16
    %10 = vector.broadcast %cst_7 : bf16 to vector<256x128xbf16>
    %11 = arith.maximumf %9, %10 : vector<256x128xbf16>
    %c0_8 = arith.constant 0 : index
    %c0_9 = arith.constant 0 : index
    %12 = vector.load %arg5[%c0_8, %c0_9] : memref<128x128xbf16, #tpu.memory_space<vmem>>, vector<128x128xbf16>
    %cst_10 = arith.constant dense<0.000000e+00> : vector<256x128xf32>
    %13 = tpu.matmul %11, %12, %cst_10 {dimension_numbers = #tpu.dot_dimension_numbers<[1], [0], [0], [1], [0, 0, 1, 1], [], []>} : vector<256x128xbf16>, vector<128x128xbf16>, vector<256x128xf32> -> vector<256x128xf32>
    %c0_11 = arith.constant 0 : index
    %c0_12 = arith.constant 0 : index
    %14 = vector.load %arg6[%c0_11, %c0_12] : memref<1x128xf32, #tpu.memory_space<vmem>>, vector<1x128xf32>
    %15 = vector.broadcast %14 : vector<1x128xf32> to vector<256x128xf32>
    %16 = arith.addf %13, %15 : vector<256x128xf32>
    %17 = arith.truncf %16 : vector<256x128xf32> to vector<256x128xbf16>
    %cst_13 = arith.constant 0.000000e+00 : bf16
    %18 = vector.broadcast %cst_13 : bf16 to vector<256x128xbf16>
    %19 = arith.maximumf %17, %18 : vector<256x128xbf16>
    %c0_14 = arith.constant 0 : index
    %c0_15 = arith.constant 0 : index
    %20 = vector.load %arg7[%c0_14, %c0_15] : memref<128x128xbf16, #tpu.memory_space<vmem>>, vector<128x128xbf16>
    %cst_16 = arith.constant dense<0.000000e+00> : vector<256x128xf32>
    %21 = tpu.matmul %19, %20, %cst_16 {dimension_numbers = #tpu.dot_dimension_numbers<[1], [0], [0], [1], [0, 0, 1, 1], [], []>} : vector<256x128xbf16>, vector<128x128xbf16>, vector<256x128xf32> -> vector<256x128xf32>
    %c0_17 = arith.constant 0 : index
    %c0_18 = arith.constant 0 : index
    %22 = vector.load %arg8[%c0_17, %c0_18] : memref<1x128xf32, #tpu.memory_space<vmem>>, vector<1x128xf32>
    %23 = vector.broadcast %22 : vector<1x128xf32> to vector<256x128xf32>
    %24 = arith.addf %21, %23 : vector<256x128xf32>
    %c0_19 = arith.constant 0 : index
    %c0_20 = arith.constant 0 : index
    %25 = vector.load %arg9[%c0_19, %c0_20] : memref<256x128xf32, #tpu.memory_space<vmem>>, vector<256x128xf32>
    tpu.vector_store %arg9[%c0_19, %c0_20], %24 {strides = array<i32>} : memref<256x128xf32, #tpu.memory_space<vmem>>, vector<256x128xf32>,
    return
  }
  func.func @transform_0(%arg0: i32) -> (i32, i32) {
    %c0_i32 = arith.constant 0 : i32
    %c0_i32_0 = arith.constant 0 : i32
    return %arg0, %c0_i32 : i32, i32
  }
  func.func @transform_1(%arg0: i32) -> (i32, i32) {
    %c0_i32 = arith.constant 0 : i32
    %c0_i32_0 = arith.constant 0 : i32
    return %arg0, %c0_i32 : i32, i32
  }
  func.func @transform_2(%arg0: i32) -> (i32, i32) {
    %c0_i32 = arith.constant 0 : i32
    %c0_i32_0 = arith.constant 0 : i32
    %c0_i32_1 = arith.constant 0 : i32
    return %c0_i32, %c0_i32_0 : i32, i32
  }
  func.func @transform_3(%arg0: i32) -> (i32, i32) {
    %c0_i32 = arith.constant 0 : i32
    %c0_i32_0 = arith.constant 0 : i32
    %c0_i32_1 = arith.constant 0 : i32
    return %c0_i32, %c0_i32_0 : i32, i32
  }
  func.func @transform_4(%arg0: i32) -> (i32, i32) {
    %c0_i32 = arith.constant 0 : i32
    %c0_i32_0 = arith.constant 0 : i32
    %c0_i32_1 = arith.constant 0 : i32
    return %c0_i32, %c0_i32_0 : i32, i32
  }
  func.func @transform_5(%arg0: i32) -> (i32, i32) {
    %c0_i32 = arith.constant 0 : i32
    %c0_i32_0 = arith.constant 0 : i32
    %c0_i32_1 = arith.constant 0 : i32
    return %c0_i32, %c0_i32_0 : i32, i32
  }
  func.func @transform_6(%arg0: i32) -> (i32, i32) {
    %c0_i32 = arith.constant 0 : i32
    %c0_i32_0 = arith.constant 0 : i32
    %c0_i32_1 = arith.constant 0 : i32
    return %c0_i32, %c0_i32_0 : i32, i32
  }
  func.func @transform_7(%arg0: i32) -> (i32, i32) {
    %c0_i32 = arith.constant 0 : i32
    %c0_i32_0 = arith.constant 0 : i32
    %c0_i32_1 = arith.constant 0 : i32
    return %c0_i32, %c0_i32_0 : i32, i32
  }
  func.func @transform_8(%arg0: i32) -> (i32, i32) {
    %c0_i32 = arith.constant 0 : i32
    %c0_i32_0 = arith.constant 0 : i32
    return %arg0, %c0_i32 : i32, i32
  }
}

module attributes {stable_mosaic.version = 11 : i64} {
  func.func @decoder_mlp_kernel(%arg0: i32, %arg1: memref<256x32xf32, #tpu.memory_space<vmem>>, %arg2: memref<256x32xf32, #tpu.memory_space<vmem>>, %arg3: memref<64x128xbf16, #tpu.memory_space<vmem>>, %arg4: memref<1x128xf32, #tpu.memory_space<vmem>>, %arg5: memref<128x128xbf16, #tpu.memory_space<vmem>>, %arg6: memref<1x128xf32, #tpu.memory_space<vmem>>, %arg7: memref<128x128xbf16, #tpu.memory_space<vmem>>, %arg8: memref<1x128xf32, #tpu.memory_space<vmem>>, %arg9: memref<256x128xf32, #tpu.memory_space<vmem>>) attributes {dimension_semantics = [#tpu.dimension_semantics<parallel>], iteration_bounds = array<i64: 1>, scalar_prefetch = 0 : i64, scratch_operands = 0 : i64, tpu.core_type = #tpu.core_type<tc>, window_params = [{transform_indices = @transform_0, window_bounds = array<i64: 256, 32>}, {transform_indices = @transform_1, window_bounds = array<i64: 256, 32>}, {pipeline_mode = #tpu.pipeline_mode<synchronous>, transform_indices = @transform_2, window_bounds = array<i64: 64, 128>}, {pipeline_mode = #tpu.pipeline_mode<synchronous>, transform_indices = @transform_3, window_bounds = array<i64: 1, 128>}, {pipeline_mode = #tpu.pipeline_mode<synchronous>, transform_indices = @transform_4, window_bounds = array<i64: 128, 128>}, {pipeline_mode = #tpu.pipeline_mode<synchronous>, transform_indices = @transform_5, window_bounds = array<i64: 1, 128>}, {pipeline_mode = #tpu.pipeline_mode<synchronous>, transform_indices = @transform_6, window_bounds = array<i64: 128, 128>}, {pipeline_mode = #tpu.pipeline_mode<synchronous>, transform_indices = @transform_7, window_bounds = array<i64: 1, 128>}, {transform_indices = @transform_8, window_bounds = array<i64: 256, 128>}]} {
    %c0 = arith.constant 0 : index
    %c0_0 = arith.constant 0 : index
    %0 = vector.load %arg1[%c0, %c0_0] : memref<256x32xf32, #tpu.memory_space<vmem>>, vector<256x32xf32>
    %c0_1 = arith.constant 0 : index
    %c0_2 = arith.constant 0 : index
    %1 = vector.load %arg2[%c0_1, %c0_2] : memref<256x32xf32, #tpu.memory_space<vmem>>, vector<256x32xf32>
    %2 = tpu.concatenate %0, %1 in 1 : vector<256x32xf32>, vector<256x32xf32> -> vector<256x64xf32>
    %3 = arith.truncf %2 : vector<256x64xf32> to vector<256x64xbf16>
    %c0_3 = arith.constant 0 : index
    %c0_4 = arith.constant 0 : index
    %4 = vector.load %arg3[%c0_3, %c0_4] : memref<64x128xbf16, #tpu.memory_space<vmem>>, vector<64x128xbf16>
    %cst = arith.constant dense<0.000000e+00> : vector<256x128xf32>
    %5 = tpu.matmul %3, %4, %cst {dimension_numbers = #tpu.dot_dimension_numbers<[1], [0], [0], [1], [0, 0, 1, 1], [], []>} : vector<256x64xbf16>, vector<64x128xbf16>, vector<256x128xf32> -> vector<256x128xf32>
    %c0_5 = arith.constant 0 : index
    %c0_6 = arith.constant 0 : index
    %6 = vector.load %arg4[%c0_5, %c0_6] : memref<1x128xf32, #tpu.memory_space<vmem>>, vector<1x128xf32>
    %7 = vector.broadcast %6 : vector<1x128xf32> to vector<256x128xf32>
    %8 = arith.addf %5, %7 : vector<256x128xf32>
    %9 = arith.truncf %8 : vector<256x128xf32> to vector<256x128xbf16>
    %cst_7 = arith.constant 0.000000e+00 : bf16
    %10 = vector.broadcast %cst_7 : bf16 to vector<256x128xbf16>
    %11 = arith.maximumf %9, %10 : vector<256x128xbf16>
    %c0_8 = arith.constant 0 : index
    %c0_9 = arith.constant 0 : index
    %12 = vector.load %arg5[%c0_8, %c0_9] : memref<128x128xbf16, #tpu.memory_space<vmem>>, vector<128x128xbf16>
    %cst_10 = arith.constant dense<0.000000e+00> : vector<256x128xf32>
    %13 = tpu.matmul %11, %12, %cst_10 {dimension_numbers = #tpu.dot_dimension_numbers<[1], [0], [0], [1], [0, 0, 1, 1], [], []>} : vector<256x128xbf16>, vector<128x128xbf16>, vector<256x128xf32> -> vector<256x128xf32>
    %c0_11 = arith.constant 0 : index
    %c0_12 = arith.constant 0 : index
    %14 = vector.load %arg6[%c0_11, %c0_12] : memref<1x128xf32, #tpu.memory_space<vmem>>, vector<1x128xf32>
    %15 = vector.broadcast %14 : vector<1x128xf32> to vector<256x128xf32>
    %16 = arith.addf %13, %15 : vector<256x128xf32>
    %17 = arith.truncf %16 : vector<256x128xf32> to vector<256x128xbf16>
    %cst_13 = arith.constant 0.000000e+00 : bf16
    %18 = vector.broadcast %cst_13 : bf16 to vector<256x128xbf16>
    %19 = arith.maximumf %17, %18 : vector<256x128xbf16>
    %c0_14 = arith.constant 0 : index
    %c0_15 = arith.constant 0 : index
    %20 = vector.load %arg7[%c0_14, %c0_15] : memref<128x128xbf16, #tpu.memory_space<vmem>>, vector<128x128xbf16>
    %cst_16 = arith.constant dense<0.000000e+00> : vector<256x128xf32>
    %21 = tpu.matmul %19, %20, %cst_16 {dimension_numbers = #tpu.dot_dimension_numbers<[1], [0], [0], [1], [0, 0, 1, 1], [], []>} : vector<256x128xbf16>, vector<128x128xbf16>, vector<256x128xf32> -> vector<256x128xf32>
    %c0_17 = arith.constant 0 : index
    %c0_18 = arith.constant 0 : index
    %22 = vector.load %arg8[%c0_17, %c0_18] : memref<1x128xf32, #tpu.memory_space<vmem>>, vector<1x128xf32>
    %23 = vector.broadcast %22 : vector<1x128xf32> to vector<256x128xf32>
    %24 = arith.addf %21, %23 : vector<256x128xf32>
    %c0_19 = arith.constant 0 : index
    %c0_20 = arith.constant 0 : index
    %25 = vector.load %arg9[%c0_19, %c0_20] : memref<256x128xf32, #tpu.memory_space<vmem>>, vector<256x128xf32>
    tpu.vector_store %arg9[%c0_19, %c0_20], %24 {strides = array<i32>} : memref<256x128xf32, #tpu.memory_space<vmem>>, vector<256x128xf32>,
    return
  }
  func.func @transform_0(%arg0: i32) -> (i32, i32) {
    %c0_i32 = arith.constant 0 : i32
    %c0_i32_0 = arith.constant 0 : i32
    return %arg0, %c0_i32 : i32, i32
  }
  func.func @transform_1(%arg0: i32) -> (i32, i32) {
    %c0_i32 = arith.constant 0 : i32
    %c0_i32_0 = arith.constant 0 : i32
    return %arg0, %c0_i32 : i32, i32
  }
  func.func @transform_2(%arg0: i32) -> (i32, i32) {
    %c0_i32 = arith.constant 0 : i32
    %c0_i32_0 = arith.constant 0 : i32
    %c0_i32_1 = arith.constant 0 : i32
    return %c0_i32, %c0_i32_0 : i32, i32
  }
  func.func @transform_3(%arg0: i32) -> (i32, i32) {
    %c0_i32 = arith.constant 0 : i32
    %c0_i32_0 = arith.constant 0 : i32
    %c0_i32_1 = arith.constant 0 : i32
    return %c0_i32, %c0_i32_0 : i32, i32
  }
  func.func @transform_4(%arg0: i32) -> (i32, i32) {
    %c0_i32 = arith.constant 0 : i32
    %c0_i32_0 = arith.constant 0 : i32
    %c0_i32_1 = arith.constant 0 : i32
    return %c0_i32, %c0_i32_0 : i32, i32
  }
  func.func @transform_5(%arg0: i32) -> (i32, i32) {
    %c0_i32 = arith.constant 0 : i32
    %c0_i32_0 = arith.constant 0 : i32
    %c0_i32_1 = arith.constant 0 : i32
    return %c0_i32, %c0_i32_0 : i32, i32
  }
  func.func @transform_6(%arg0: i32) -> (i32, i32) {
    %c0_i32 = arith.constant 0 : i32
    %c0_i32_0 = arith.constant 0 : i32
    %c0_i32_1 = arith.constant 0 : i32
    return %c0_i32, %c0_i32_0 : i32, i32
  }
  func.func @transform_7(%arg0: i32) -> (i32, i32) {
    %c0_i32 = arith.constant 0 : i32
    %c0_i32_0 = arith.constant 0 : i32
    %c0_i32_1 = arith.constant 0 : i32
    return %c0_i32, %c0_i32_0 : i32, i32
  }
  func.func @transform_8(%arg0: i32) -> (i32, i32) {
    %c0_i32 = arith.constant 0 : i32
    %c0_i32_0 = arith.constant 0 : i32
    return %arg0, %c0_i32 : i32, i32
  }
}

</mosaic_0001>

<llo_original>
// kernel: tpu_custom_call.1
$region0: #{tpu_custom_call.1}
  #allocation0 [shape = 'u32[]', space=smem, size = 0x4, offset = 0x4, fixed_abs, tag = 'smem constant byte address 0x4 - core index']
  #allocation1 [shape = 'u32[72,128]{1,0:T(1,128)}', space=vmem, size = 0x9000, scoped, tag = 'internal scratch']
  %s0 = inlined_call_operand.vmem [shape: f32[256,32], index: 0, kind: input, shape index: {}]
  %s1 = inlined_call_operand.vmem [shape: f32[256,32], index: 1, kind: input, shape index: {}]
  %s2 = inlined_call_operand.vmem [shape: bf16[64,128], index: 2, kind: input, shape index: {}]
  %s3 = inlined_call_operand.vmem [shape: f32[1,128], index: 3, kind: input, shape index: {}]
  %s4 = inlined_call_operand.vmem [shape: bf16[128,128], index: 4, kind: input, shape index: {}]
  %s5 = inlined_call_operand.vmem [shape: f32[1,128], index: 5, kind: input, shape index: {}]
  %s6 = inlined_call_operand.vmem [shape: bf16[128,128], index: 6, kind: input, shape index: {}]
  %s7 = inlined_call_operand.vmem [shape: f32[1,128], index: 7, kind: input, shape index: {}]
  %s8 = inlined_call_operand.hbm [shape: f32[256,128], index: 8, kind: output, shape index: {}]
  %s9 = sld [smem:[#allocation0]]
  $region42: #{tpu_custom_call.1} parent=0
    _
  %s11 = ssub.s32 1, %s9
  %s12 = scalar_select 0, %s11, %s9
  $region1: #{tpu_custom_call.1} parent=0
    #allocation2 [shape = 'u8[131072]{0}', space=vmem, size = 0x20000, scoped, tag = 'output window, operand 0, single buffered']
    #allocation3 [shape = 's32[1]{0}', space=sflag, size = 0x4, scoped, tag = 'scoped memory for tpu_custom_call.1']
    %13 = vsyncpa [#allocation3], 0
    // Predicated region
    $region2: #{tpu_custom_call.1} parent=1 // pred_check
      _
    $region3: #{tpu_custom_call.1} parent=1 // pred_check_branch
      %15 = sbr.rel (0) target = $region5
    $region4: #{tpu_custom_call.1} parent=1 // pred_region
      _
    $region5: #{tpu_custom_call.1} parent=1 // pred_fallthru
      _
    // Predicated region
    $region6: #{tpu_custom_call.1} parent=1 // pred_check
      _
    $region7: #{tpu_custom_call.1} parent=1 // pred_check_branch
      %17 = sbr.rel (0) target = $region9
    $region8: #{tpu_custom_call.1} parent=1 // pred_region
      _
    $region9: #{tpu_custom_call.1} parent=1 // pred_fallthru
      _
    // Predicated region
    $region10: #{tpu_custom_call.1} parent=1 // pred_check
      _
    $region11: #{tpu_custom_call.1} parent=1 // pred_check_branch
      %19 = sbr.rel (0) target = $region13
    $region12: #{tpu_custom_call.1} parent=1 // pred_region
      _
    $region13: #{tpu_custom_call.1} parent=1 // pred_fallthru
      _
    // Predicated region
    $region14: #{tpu_custom_call.1} parent=1 // pred_check
      _
    $region15: #{tpu_custom_call.1} parent=1 // pred_check_branch
      %21 = sbr.rel (0) target = $region17
    $region16: #{tpu_custom_call.1} parent=1 // pred_region
      _
    $region17: #{tpu_custom_call.1} parent=1 // pred_fallthru
      _
    // Predicated region
    $region18: #{tpu_custom_call.1} parent=1 // pred_check
      _
    $region19: #{tpu_custom_call.1} parent=1 // pred_check_branch
      %23 = sbr.rel (0) target = $region21
    $region20: #{tpu_custom_call.1} parent=1 // pred_region
      _
    $region21: #{tpu_custom_call.1} parent=1 // pred_fallthru
      _
    // Predicated region
    $region22: #{tpu_custom_call.1} parent=1 // pred_check
      _
    $region23: #{tpu_custom_call.1} parent=1 // pred_check_branch
      %25 = sbr.rel (0) target = $region25
    $region24: #{tpu_custom_call.1} parent=1 // pred_region
      _
    $region25: #{tpu_custom_call.1} parent=1 // pred_fallthru
      _
    // Predicated region
    $region26: #{tpu_custom_call.1} parent=1 // pred_check
      _
    $region27: #{tpu_custom_call.1} parent=1 // pred_check_branch
      %27 = sbr.rel (0) target = $region29
    $region28: #{tpu_custom_call.1} parent=1 // pred_region
      _
    $region29: #{tpu_custom_call.1} parent=1 // pred_fallthru
      _
    // Predicated region
    $region30: #{tpu_custom_call.1} parent=1 // pred_check
      _
    $region31: #{tpu_custom_call.1} parent=1 // pred_check_branch
      %29 = sbr.rel (0) target = $region33
    $region32: #{tpu_custom_call.1} parent=1 // pred_region
      _
    $region33: #{tpu_custom_call.1} parent=1 // pred_fallthru
      _
    %v31 = vld [vmem:[%s0] sm:$0xff]
    %v32 = vld [vmem:[%s0 + $0x8] sm:$0xff]
    %v33 = vld [vmem:[%s0 + $0x10] sm:$0xff]
    %v34 = vld [vmem:[%s0 + $0x18] sm:$0xff]
    %v35 = vld [vmem:[%s0 + $0x20] sm:$0xff]
    %v36 = vld [vmem:[%s0 + $0x28] sm:$0xff]
    %v37 = vld [vmem:[%s0 + $0x30] sm:$0xff]
    %v38 = vld [vmem:[%s0 + $0x38] sm:$0xff]
    %v39 = vld [vmem:[%s0 + $0x40] sm:$0xff]
    %v40 = vld [vmem:[%s0 + $0x48] sm:$0xff]
    %v41 = vld [vmem:[%s0 + $0x50] sm:$0xff]
    %v42 = vld [vmem:[%s0 + $0x58] sm:$0xff]
    %v43 = vld [vmem:[%s0 + $0x60] sm:$0xff]
    %v44 = vld [vmem:[%s0 + $0x68] sm:$0xff]
    %v45 = vld [vmem:[%s0 + $0x70] sm:$0xff]
    %v46 = vld [vmem:[%s0 + $0x78] sm:$0xff]
    %v47 = vld [vmem:[%s0 + $0x80] sm:$0xff]
    %v48 = vld [vmem:[%s0 + $0x88] sm:$0xff]
    %v49 = vld [vmem:[%s0 + $0x90] sm:$0xff]
    %v50 = vld [vmem:[%s0 + $0x98] sm:$0xff]
    %v51 = vld [vmem:[%s0 + $0xa0] sm:$0xff]
    %v52 = vld [vmem:[%s0 + $0xa8] sm:$0xff]
    %v53 = vld [vmem:[%s0 + $0xb0] sm:$0xff]
    %v54 = vld [vmem:[%s0 + $0xb8] sm:$0xff]
    %v55 = vld [vmem:[%s0 + $0xc0] sm:$0xff]
    %v56 = vld [vmem:[%s0 + $0xc8] sm:$0xff]
    %v57 = vld [vmem:[%s0 + $0xd0] sm:$0xff]
    %v58 = vld [vmem:[%s0 + $0xd8] sm:$0xff]
    %v59 = vld [vmem:[%s0 + $0xe0] sm:$0xff]
    %v60 = vld [vmem:[%s0 + $0xe8] sm:$0xff]
    %v61 = vld [vmem:[%s0 + $0xf0] sm:$0xff]
    %v62 = vld [vmem:[%s0 + $0xf8] sm:$0xff]
    %v63 = vld [vmem:[%s1] sm:$0xff]
    %v64 = vld [vmem:[%s1 + $0x8] sm:$0xff]
    %v65 = vld [vmem:[%s1 + $0x10] sm:$0xff]
    %v66 = vld [vmem:[%s1 + $0x18] sm:$0xff]
    %v67 = vld [vmem:[%s1 + $0x20] sm:$0xff]
    %v68 = vld [vmem:[%s1 + $0x28] sm:$0xff]
    %v69 = vld [vmem:[%s1 + $0x30] sm:$0xff]
    %v70 = vld [vmem:[%s1 + $0x38] sm:$0xff]
    %v71 = vld [vmem:[%s1 + $0x40] sm:$0xff]
    %v72 = vld [vmem:[%s1 + $0x48] sm:$0xff]
    %v73 = vld [vmem:[%s1 + $0x50] sm:$0xff]
    %v74 = vld [vmem:[%s1 + $0x58] sm:$0xff]
    %v75 = vld [vmem:[%s1 + $0x60] sm:$0xff]
    %v76 = vld [vmem:[%s1 + $0x68] sm:$0xff]
    %v77 = vld [vmem:[%s1 + $0x70] sm:$0xff]
    %v78 = vld [vmem:[%s1 + $0x78] sm:$0xff]
    %v79 = vld [vmem:[%s1 + $0x80] sm:$0xff]
    %v80 = vld [vmem:[%s1 + $0x88] sm:$0xff]
    %v81 = vld [vmem:[%s1 + $0x90] sm:$0xff]
    %v82 = vld [vmem:[%s1 + $0x98] sm:$0xff]
    %v83 = vld [vmem:[%s1 + $0xa0] sm:$0xff]
    %v84 = vld [vmem:[%s1 + $0xa8] sm:$0xff]
    %v85 = vld [vmem:[%s1 + $0xb0] sm:$0xff]
    %v86 = vld [vmem:[%s1 + $0xb8] sm:$0xff]
    %v87 = vld [vmem:[%s1 + $0xc0] sm:$0xff]
    %v88 = vld [vmem:[%s1 + $0xc8] sm:$0xff]
    %v89 = vld [vmem:[%s1 + $0xd0] sm:$0xff]
    %v90 = vld [vmem:[%s1 + $0xd8] sm:$0xff]
    %v91 = vld [vmem:[%s1 + $0xe0] sm:$0xff]
    %v92 = vld [vmem:[%s1 + $0xe8] sm:$0xff]
    %v93 = vld [vmem:[%s1 + $0xf0] sm:$0xff]
    %v94 = vld [vmem:[%s1 + $0xf8] sm:$0xff]
    %127 = vrot.lane.b32.xlu0 %v63, 32
    %v128 = vpop.permute.xlu0 %127
    %129 = vrot.lane.b32.xlu0 %v64, 32
    %v130 = vpop.permute.xlu0 %129
    %131 = vrot.lane.b32.xlu0 %v65, 32
    %v132 = vpop.permute.xlu0 %131
    %133 = vrot.lane.b32.xlu0 %v66, 32
    %v134 = vpop.permute.xlu0 %133
    %135 = vrot.lane.b32.xlu0 %v67, 32
    %v136 = vpop.permute.xlu0 %135
    %137 = vrot.lane.b32.xlu0 %v68, 32
    %v138 = vpop.permute.xlu0 %137
    %139 = vrot.lane.b32.xlu0 %v69, 32
    %v140 = vpop.permute.xlu0 %139
    %141 = vrot.lane.b32.xlu0 %v70, 32
    %v142 = vpop.permute.xlu0 %141
    %143 = vrot.lane.b32.xlu0 %v71, 32
    %v144 = vpop.permute.xlu0 %143
    %145 = vrot.lane.b32.xlu0 %v72, 32
    %v146 = vpop.permute.xlu0 %145
    %147 = vrot.lane.b32.xlu0 %v73, 32
    %v148 = vpop.permute.xlu0 %147
    %149 = vrot.lane.b32.xlu0 %v74, 32
    %v150 = vpop.permute.xlu0 %149
    %151 = vrot.lane.b32.xlu0 %v75, 32
    %v152 = vpop.permute.xlu0 %151
    %153 = vrot.lane.b32.xlu0 %v76, 32
    %v154 = vpop.permute.xlu0 %153
    %155 = vrot.lane.b32.xlu0 %v77, 32
    %v156 = vpop.permute.xlu0 %155
    %157 = vrot.lane.b32.xlu0 %v78, 32
    %v158 = vpop.permute.xlu0 %157
    %159 = vrot.lane.b32.xlu0 %v79, 32
    %v160 = vpop.permute.xlu0 %159
    %161 = vrot.lane.b32.xlu0 %v80, 32
    %v162 = vpop.permute.xlu0 %161
    %163 = vrot.lane.b32.xlu0 %v81, 32
    %v164 = vpop.permute.xlu0 %163
    %165 = vrot.lane.b32.xlu0 %v82, 32
    %v166 = vpop.permute.xlu0 %165
    %167 = vrot.lane.b32.xlu0 %v83, 32
    %v168 = vpop.permute.xlu0 %167
    %169 = vrot.lane.b32.xlu0 %v84, 32
    %v170 = vpop.permute.xlu0 %169
    %171 = vrot.lane.b32.xlu0 %v85, 32
    %v172 = vpop.permute.xlu0 %171
    %173 = vrot.lane.b32.xlu0 %v86, 32
    %v174 = vpop.permute.xlu0 %173
    %175 = vrot.lane.b32.xlu0 %v87, 32
    %v176 = vpop.permute.xlu0 %175
    %177 = vrot.lane.b32.xlu0 %v88, 32
    %v178 = vpop.permute.xlu0 %177
    %179 = vrot.lane.b32.xlu0 %v89, 32
    %v180 = vpop.permute.xlu0 %179
    %181 = vrot.lane.b32.xlu0 %v90, 32
    %v182 = vpop.permute.xlu0 %181
    %183 = vrot.lane.b32.xlu0 %v91, 32
    %v184 = vpop.permute.xlu0 %183
    %185 = vrot.lane.b32.xlu0 %v92, 32
    %v186 = vpop.permute.xlu0 %185
    %187 = vrot.lane.b32.xlu0 %v93, 32
    %v188 = vpop.permute.xlu0 %187
    %189 = vrot.lane.b32.xlu0 %v94, 32
    %v190 = vpop.permute.xlu0 %189
    %vm223 = vcmask 261120
    %v224 = vsel %vm223, %v31, %v128
    %v225 = vsel %vm223, %v32, %v130
    %v226 = vsel %vm223, %v33, %v132
    %v227 = vsel %vm223, %v34, %v134
    %v228 = vsel %vm223, %v35, %v136
    %v229 = vsel %vm223, %v36, %v138
    %v230 = vsel %vm223, %v37, %v140
    %v231 = vsel %vm223, %v38, %v142
    %v232 = vsel %vm223, %v39, %v144
    %v233 = vsel %vm223, %v40, %v146
    %v234 = vsel %vm223, %v41, %v148
    %v235 = vsel %vm223, %v42, %v150
    %v236 = vsel %vm223, %v43, %v152
    %v237 = vsel %vm223, %v44, %v154
    %v238 = vsel %vm223, %v45, %v156
    %v239 = vsel %vm223, %v46, %v158
    %v240 = vsel %vm223, %v47, %v160
    %v241 = vsel %vm223, %v48, %v162
    %v242 = vsel %vm223, %v49, %v164
    %v243 = vsel %vm223, %v50, %v166
    %v244 = vsel %vm223, %v51, %v168
    %v245 = vsel %vm223, %v52, %v170
    %v246 = vsel %vm223, %v53, %v172
    %v247 = vsel %vm223, %v54, %v174
    %v248 = vsel %vm223, %v55, %v176
    %v249 = vsel %vm223, %v56, %v178
    %v250 = vsel %vm223, %v57, %v180
    %v251 = vsel %vm223, %v58, %v182
    %v252 = vsel %vm223, %v59, %v184
    %v253 = vsel %vm223, %v60, %v186
    %v254 = vsel %vm223, %v61, %v188
    %v255 = vsel %vm223, %v62, %v190
    %v256 = vpack.c.bf16 %v225, %v224
    %v257 = vpack.c.bf16 %v227, %v226
    %v258 = vpack.c.bf16 %v229, %v228
    %v259 = vpack.c.bf16 %v231, %v230
    %v260 = vpack.c.bf16 %v233, %v232
    %v261 = vpack.c.bf16 %v235, %v234
    %v262 = vpack.c.bf16 %v237, %v236
    %v263 = vpack.c.bf16 %v239, %v238
    %v264 = vpack.c.bf16 %v241, %v240
    %v265 = vpack.c.bf16 %v243, %v242
    %v266 = vpack.c.bf16 %v245, %v244
    %v267 = vpack.c.bf16 %v247, %v246
    %v268 = vpack.c.bf16 %v249, %v248
    %v269 = vpack.c.bf16 %v251, %v250
    %v270 = vpack.c.bf16 %v253, %v252
    %v271 = vpack.c.bf16 %v255, %v254
    %v272 = vld [vmem:[%s2] sm:$0xf]
    %v273 = vld [vmem:[%s2 + $0x4] sm:$0xf]
    %v274 = vld [vmem:[%s2 + $0x8] sm:$0xf]
    %v275 = vld [vmem:[%s2 + $0xc] sm:$0xf]
    %v276 = vld [vmem:[%s2 + $0x10] sm:$0xf]
    %v277 = vld [vmem:[%s2 + $0x14] sm:$0xf]
    %v278 = vld [vmem:[%s2 + $0x18] sm:$0xf]
    %v279 = vld [vmem:[%s2 + $0x1c] sm:$0xf]
    %v280 = vld [vmem:[%s3] sm:$0x1]
    %v282 = vperm.slane %v280, 0
    %v292 = vunpack.c.l.b16 %v272
    %v293 = vunpack.c.l.b16 %v273
    %v294 = vunpack.c.l.b16 %v274
    %v295 = vunpack.c.l.b16 %v275
    %v296 = vunpack.c.l.b16 %v276
    %v297 = vunpack.c.l.b16 %v277
    %v298 = vunpack.c.l.b16 %v278
    %v299 = vunpack.c.l.b16 %v279
    %v300 = vpack.c.b16 %v293, %v292
    %v301 = vpack.c.b16 %v295, %v294
    %v302 = vpack.c.b16 %v297, %v296
    %v303 = vpack.c.b16 %v299, %v298
    %vm308 = vcmask 523264
    %v310 = vsel %vm308, %v256, 0
    %v313 = vsel %vm308, %v257, 0
    %v316 = vsel %vm308, %v258, 0
    %v319 = vsel %vm308, %v259, 0
    %v322 = vsel %vm308, %v260, 0
    %v325 = vsel %vm308, %v261, 0
    %v328 = vsel %vm308, %v262, 0
    %v331 = vsel %vm308, %v263, 0
    %v334 = vsel %vm308, %v264, 0
    %v337 = vsel %vm308, %v265, 0
    %v340 = vsel %vm308, %v266, 0
    %v343 = vsel %vm308, %v267, 0
    %v346 = vsel %vm308, %v268, 0
    %v349 = vsel %vm308, %v269, 0
    %v352 = vsel %vm308, %v270, 0
    %v355 = vsel %vm308, %v271, 0
    %357 = vmatpush.bf16.msra.mxu0 0
    %358 = vmatpush.bf16.msra.mxu0 0
    %359 = vmatpush.bf16.msra.mxu0 0
    %360 = vmatpush.bf16.msra.mxu0 0
    %361 = vmatpush.bf16.msra.mxu0 %v303
    %362 = vmatpush.bf16.msra.mxu0 %v302
    %363 = vmatpush.bf16.msra.mxu0 %v301
    %364 = vmatpush.bf16.msra.mxu0 %v300
    %365 = vmatmul.bf16.gmra.mxu0 %v310
    %v366 = vpop.f32.mrf.mxu0
    %v367 = vadd.f32 %v282, %v366
    %v368 = vpop.f32.mrf.mxu0
    %v369 = vadd.f32 %v282, %v368
    %370 = vmatmul.bf16.gmra.mxu0 %v313
    %v371 = vpop.f32.mrf.mxu0
    %v372 = vadd.f32 %v282, %v371
    %v373 = vpop.f32.mrf.mxu0
    %v374 = vadd.f32 %v282, %v373
    %375 = vmatmul.bf16.gmra.mxu0 %v316
    %v376 = vpop.f32.mrf.mxu0
    %v377 = vadd.f32 %v282, %v376
    %v378 = vpop.f32.mrf.mxu0
    %v379 = vadd.f32 %v282, %v378
    %380 = vmatmul.bf16.gmra.mxu0 %v319
    %v381 = vpop.f32.mrf.mxu0
    %v382 = vadd.f32 %v282, %v381
    %v383 = vpop.f32.mrf.mxu0
    %v384 = vadd.f32 %v282, %v383
    %385 = vmatmul.bf16.gmra.mxu0 %v322
    %v386 = vpop.f32.mrf.mxu0
    %v387 = vadd.f32 %v282, %v386
    %v388 = vpop.f32.mrf.mxu0
    %v389 = vadd.f32 %v282, %v388
    %390 = vmatmul.bf16.gmra.mxu0 %v325
    %v391 = vpop.f32.mrf.mxu0
    %v392 = vadd.f32 %v282, %v391
    %v393 = vpop.f32.mrf.mxu0
    %v394 = vadd.f32 %v282, %v393
    %395 = vmatmul.bf16.gmra.mxu0 %v328
    %v396 = vpop.f32.mrf.mxu0
    %v397 = vadd.f32 %v282, %v396
    %v398 = vpop.f32.mrf.mxu0
    %v399 = vadd.f32 %v282, %v398
    %400 = vmatmul.bf16.gmra.mxu0 %v331
    %v401 = vpop.f32.mrf.mxu0
    %v402 = vadd.f32 %v282, %v401
    %v403 = vpop.f32.mrf.mxu0
    %v404 = vadd.f32 %v282, %v403
    %405 = vmatmul.bf16.gmra.mxu0 %v334
    %v406 = vpop.f32.mrf.mxu0
    %v407 = vadd.f32 %v282, %v406
    %v408 = vpop.f32.mrf.mxu0
    %v409 = vadd.f32 %v282, %v408
    %410 = vmatmul.bf16.gmra.mxu0 %v337
    %v411 = vpop.f32.mrf.mxu0
    %v412 = vadd.f32 %v282, %v411
    %v413 = vpop.f32.mrf.mxu0
    %v414 = vadd.f32 %v282, %v413
    %415 = vmatmul.bf16.gmra.mxu0 %v340
    %v416 = vpop.f32.mrf.mxu0
    %v417 = vadd.f32 %v282, %v416
    %v418 = vpop.f32.mrf.mxu0
    %v419 = vadd.f32 %v282, %v418
    %420 = vmatmul.bf16.gmra.mxu0 %v343
    %v421 = vpop.f32.mrf.mxu0
    %v422 = vadd.f32 %v282, %v421
    %v423 = vpop.f32.mrf.mxu0
    %v424 = vadd.f32 %v282, %v423
    %425 = vmatmul.bf16.gmra.mxu0 %v346
    %v426 = vpop.f32.mrf.mxu0
    %v427 = vadd.f32 %v282, %v426
    %v428 = vpop.f32.mrf.mxu0
    %v429 = vadd.f32 %v282, %v428
    %430 = vmatmul.bf16.gmra.mxu0 %v349
    %v431 = vpop.f32.mrf.mxu0
    %v432 = vadd.f32 %v282, %v431
    %v433 = vpop.f32.mrf.mxu0
    %v434 = vadd.f32 %v282, %v433
    %435 = vmatmul.bf16.gmra.mxu0 %v352
    %v436 = vpop.f32.mrf.mxu0
    %v437 = vadd.f32 %v282, %v436
    %v438 = vpop.f32.mrf.mxu0
    %v439 = vadd.f32 %v282, %v438
    %440 = vmatmul.bf16.gmra.mxu0 %v355
    %v441 = vpop.f32.mrf.mxu0
    %v442 = vadd.f32 %v282, %v441
    %v443 = vpop.f32.mrf.mxu0
    %v444 = vadd.f32 %v282, %v443
    %445 = vdwg.mxu0
    %v446 = vpack.c.bf16 %v367, %v367
    %v447 = vpack.c.bf16 %v369, %v369
    %v448 = vpack.c.bf16 %v372, %v372
    %v449 = vpack.c.bf16 %v374, %v374
    %v450 = vpack.c.bf16 %v377, %v377
    %v451 = vpack.c.bf16 %v379, %v379
    %v452 = vpack.c.bf16 %v382, %v382
    %v453 = vpack.c.bf16 %v384, %v384
    %v454 = vpack.c.bf16 %v387, %v387
    %v455 = vpack.c.bf16 %v389, %v389
    %v456 = vpack.c.bf16 %v392, %v392
    %v457 = vpack.c.bf16 %v394, %v394
    %v458 = vpack.c.bf16 %v397, %v397
    %v459 = vpack.c.bf16 %v399, %v399
    %v460 = vpack.c.bf16 %v402, %v402
    %v461 = vpack.c.bf16 %v404, %v404
    %v462 = vpack.c.bf16 %v407, %v407
    %v463 = vpack.c.bf16 %v409, %v409
    %v464 = vpack.c.bf16 %v412, %v412
    %v465 = vpack.c.bf16 %v414, %v414
    %v466 = vpack.c.bf16 %v417, %v417
    %v467 = vpack.c.bf16 %v419, %v419
    %v468 = vpack.c.bf16 %v422, %v422
    %v469 = vpack.c.bf16 %v424, %v424
    %v470 = vpack.c.bf16 %v427, %v427
    %v471 = vpack.c.bf16 %v429, %v429
    %v472 = vpack.c.bf16 %v432, %v432
    %v473 = vpack.c.bf16 %v434, %v434
    %v474 = vpack.c.bf16 %v437, %v437
    %v475 = vpack.c.bf16 %v439, %v439
    %v476 = vpack.c.bf16 %v442, %v442
    %v477 = vpack.c.bf16 %v444, %v444
    %v478 = vunpack.c.l.bf16 %v446
    %v479 = vunpack.c.l.bf16 %v447
    %v480 = vunpack.c.l.bf16 %v448
    %v481 = vunpack.c.l.bf16 %v449
    %v482 = vunpack.c.l.bf16 %v450
    %v483 = vunpack.c.l.bf16 %v451
    %v484 = vunpack.c.l.bf16 %v452
    %v485 = vunpack.c.l.bf16 %v453
    %v486 = vunpack.c.l.bf16 %v454
    %v487 = vunpack.c.l.bf16 %v455
    %v488 = vunpack.c.l.bf16 %v456
    %v489 = vunpack.c.l.bf16 %v457
    %v490 = vunpack.c.l.bf16 %v458
    %v491 = vunpack.c.l.bf16 %v459
    %v492 = vunpack.c.l.bf16 %v460
    %v493 = vunpack.c.l.bf16 %v461
    %v494 = vunpack.c.l.bf16 %v462
    %v495 = vunpack.c.l.bf16 %v463
    %v496 = vunpack.c.l.bf16 %v464
    %v497 = vunpack.c.l.bf16 %v465
    %v498 = vunpack.c.l.bf16 %v466
    %v499 = vunpack.c.l.bf16 %v467
    %v500 = vunpack.c.l.bf16 %v468
    %v501 = vunpack.c.l.bf16 %v469
    %v502 = vunpack.c.l.bf16 %v470
    %v503 = vunpack.c.l.bf16 %v471
    %v504 = vunpack.c.l.bf16 %v472
    %v505 = vunpack.c.l.bf16 %v473
    %v506 = vunpack.c.l.bf16 %v474
    %v507 = vunpack.c.l.bf16 %v475
    %v508 = vunpack.c.l.bf16 %v476
    %v509 = vunpack.c.l.bf16 %v477
    %v510 = vmax.f32 %v478, 0.0
    %v511 = vmax.f32 %v479, 0.0
    %v512 = vmax.f32 %v480, 0.0
    %v513 = vmax.f32 %v481, 0.0
    %v514 = vmax.f32 %v482, 0.0
    %v515 = vmax.f32 %v483, 0.0
    %v516 = vmax.f32 %v484, 0.0
    %v517 = vmax.f32 %v485, 0.0
    %v518 = vmax.f32 %v486, 0.0
    %v519 = vmax.f32 %v487, 0.0
    %v520 = vmax.f32 %v488, 0.0
    %v521 = vmax.f32 %v489, 0.0
    %v522 = vmax.f32 %v490, 0.0
    %v523 = vmax.f32 %v491, 0.0
    %v524 = vmax.f32 %v492, 0.0
    %v525 = vmax.f32 %v493, 0.0
    %v526 = vmax.f32 %v494, 0.0
    %v527 = vmax.f32 %v495, 0.0
    %v528 = vmax.f32 %v496, 0.0
    %v529 = vmax.f32 %v497, 0.0
    %v530 = vmax.f32 %v498, 0.0
    %v531 = vmax.f32 %v499, 0.0
    %v532 = vmax.f32 %v500, 0.0
    %v533 = vmax.f32 %v501, 0.0
    %v534 = vmax.f32 %v502, 0.0
    %v535 = vmax.f32 %v503, 0.0
    %v536 = vmax.f32 %v504, 0.0
    %v537 = vmax.f32 %v505, 0.0
    %v538 = vmax.f32 %v506, 0.0
    %v539 = vmax.f32 %v507, 0.0
    %v540 = vmax.f32 %v508, 0.0
    %v541 = vmax.f32 %v509, 0.0
    %v542 = vpack.c.bf16 %v511, %v510
    %v543 = vpack.c.bf16 %v513, %v512
    %v544 = vpack.c.bf16 %v515, %v514
    %v545 = vpack.c.bf16 %v517, %v516
    %v546 = vpack.c.bf16 %v519, %v518
    %v547 = vpack.c.bf16 %v521, %v520
    %v548 = vpack.c.bf16 %v523, %v522
    %v549 = vpack.c.bf16 %v525, %v524
    %v550 = vpack.c.bf16 %v527, %v526
    %v551 = vpack.c.bf16 %v529, %v528
    %v552 = vpack.c.bf16 %v531, %v530
    %v553 = vpack.c.bf16 %v533, %v532
    %v554 = vpack.c.bf16 %v535, %v534
    %v555 = vpack.c.bf16 %v537, %v536
    %v556 = vpack.c.bf16 %v539, %v538
    %v557 = vpack.c.bf16 %v541, %v540
    %v558 = vld [vmem:[%s4] sm:$0xf]
    %v559 = vld [vmem:[%s4 + $0x4] sm:$0xf]
    %v560 = vld [vmem:[%s4 + $0x8] sm:$0xf]
    %v561 = vld [vmem:[%s4 + $0xc] sm:$0xf]
    %v562 = vld [vmem:[%s4 + $0x10] sm:$0xf]
    %v563 = vld [vmem:[%s4 + $0x14] sm:$0xf]
    %v564 = vld [vmem:[%s4 + $0x18] sm:$0xf]
    %v565 = vld [vmem:[%s4 + $0x1c] sm:$0xf]
    %v566 = vld [vmem:[%s4 + $0x20] sm:$0xf]
    %v567 = vld [vmem:[%s4 + $0x24] sm:$0xf]
    %v568 = vld [vmem:[%s4 + $0x28] sm:$0xf]
    %v569 = vld [vmem:[%s4 + $0x2c] sm:$0xf]
    %v570 = vld [vmem:[%s4 + $0x30] sm:$0xf]
    %v571 = vld [vmem:[%s4 + $0x34] sm:$0xf]
    %v572 = vld [vmem:[%s4 + $0x38] sm:$0xf]
    %v573 = vld [vmem:[%s4 + $0x3c] sm:$0xf]
    %v574 = vld [vmem:[%s5] sm:$0x1]
    %v576 = vperm.slane %v574, 0
    %v594 = vunpack.c.l.b16 %v558
    %v595 = vunpack.c.l.b16 %v559
    %v596 = vunpack.c.l.b16 %v560
    %v597 = vunpack.c.l.b16 %v561
    %v598 = vunpack.c.l.b16 %v562
    %v599 = vunpack.c.l.b16 %v563
    %v600 = vunpack.c.l.b16 %v564
    %v601 = vunpack.c.l.b16 %v565
    %v602 = vunpack.c.l.b16 %v566
    %v603 = vunpack.c.l.b16 %v567
    %v604 = vunpack.c.l.b16 %v568
    %v605 = vunpack.c.l.b16 %v569
    %v606 = vunpack.c.l.b16 %v570
    %v607 = vunpack.c.l.b16 %v571
    %v608 = vunpack.c.l.b16 %v572
    %v609 = vunpack.c.l.b16 %v573
    %v610 = vpack.c.b16 %v595, %v594
    %v611 = vpack.c.b16 %v597, %v596
    %v612 = vpack.c.b16 %v599, %v598
    %v613 = vpack.c.b16 %v601, %v600
    %v614 = vpack.c.b16 %v603, %v602
    %v615 = vpack.c.b16 %v605, %v604
    %v616 = vpack.c.b16 %v607, %v606
    %v617 = vpack.c.b16 %v609, %v608
    %626 = vmatpush.bf16.msra.mxu0 %v617
    %627 = vmatpush.bf16.msra.mxu0 %v616
    %628 = vmatpush.bf16.msra.mxu0 %v615
    %629 = vmatpush.bf16.msra.mxu0 %v614
    %630 = vmatpush.bf16.msra.mxu0 %v613
    %631 = vmatpush.bf16.msra.mxu0 %v612
    %632 = vmatpush.bf16.msra.mxu0 %v611
    %633 = vmatpush.bf16.msra.mxu0 %v610
    %634 = vmatmul.bf16.gmra.mxu0 %v542
    %v635 = vpop.f32.mrf.mxu0
    %v636 = vadd.f32 %v576, %v635
    %v637 = vpop.f32.mrf.mxu0
    %v638 = vadd.f32 %v576, %v637
    %639 = vmatmul.bf16.gmra.mxu0 %v543
    %v640 = vpop.f32.mrf.mxu0
    %v641 = vadd.f32 %v576, %v640
    %v642 = vpop.f32.mrf.mxu0
    %v643 = vadd.f32 %v576, %v642
    %644 = vmatmul.bf16.gmra.mxu0 %v544
    %v645 = vpop.f32.mrf.mxu0
    %v646 = vadd.f32 %v576, %v645
    %v647 = vpop.f32.mrf.mxu0
    %v648 = vadd.f32 %v576, %v647
    %649 = vmatmul.bf16.gmra.mxu0 %v545
    %v650 = vpop.f32.mrf.mxu0
    %v651 = vadd.f32 %v576, %v650
    %v652 = vpop.f32.mrf.mxu0
    %v653 = vadd.f32 %v576, %v652
    %654 = vmatmul.bf16.gmra.mxu0 %v546
    %v655 = vpop.f32.mrf.mxu0
    %v656 = vadd.f32 %v576, %v655
    %v657 = vpop.f32.mrf.mxu0
    %v658 = vadd.f32 %v576, %v657
    %659 = vmatmul.bf16.gmra.mxu0 %v547
    %v660 = vpop.f32.mrf.mxu0
    %v661 = vadd.f32 %v576, %v660
    %v662 = vpop.f32.mrf.mxu0
    %v663 = vadd.f32 %v576, %v662
    %664 = vmatmul.bf16.gmra.mxu0 %v548
    %v665 = vpop.f32.mrf.mxu0
    %v666 = vadd.f32 %v576, %v665
    %v667 = vpop.f32.mrf.mxu0
    %v668 = vadd.f32 %v576, %v667
    %669 = vmatmul.bf16.gmra.mxu0 %v549
    %v670 = vpop.f32.mrf.mxu0
    %v671 = vadd.f32 %v576, %v670
    %v672 = vpop.f32.mrf.mxu0
    %v673 = vadd.f32 %v576, %v672
    %674 = vmatmul.bf16.gmra.mxu0 %v550
    %v675 = vpop.f32.mrf.mxu0
    %v676 = vadd.f32 %v576, %v675
    %v677 = vpop.f32.mrf.mxu0
    %v678 = vadd.f32 %v576, %v677
    %679 = vmatmul.bf16.gmra.mxu0 %v551
    %v680 = vpop.f32.mrf.mxu0
    %v681 = vadd.f32 %v576, %v680
    %v682 = vpop.f32.mrf.mxu0
    %v683 = vadd.f32 %v576, %v682
    %684 = vmatmul.bf16.gmra.mxu0 %v552
    %v685 = vpop.f32.mrf.mxu0
    %v686 = vadd.f32 %v576, %v685
    %v687 = vpop.f32.mrf.mxu0
    %v688 = vadd.f32 %v576, %v687
    %689 = vmatmul.bf16.gmra.mxu0 %v553
    %v690 = vpop.f32.mrf.mxu0
    %v691 = vadd.f32 %v576, %v690
    %v692 = vpop.f32.mrf.mxu0
    %v693 = vadd.f32 %v576, %v692
    %694 = vmatmul.bf16.gmra.mxu0 %v554
    %v695 = vpop.f32.mrf.mxu0
    %v696 = vadd.f32 %v576, %v695
    %v697 = vpop.f32.mrf.mxu0
    %v698 = vadd.f32 %v576, %v697
    %699 = vmatmul.bf16.gmra.mxu0 %v555
    %v700 = vpop.f32.mrf.mxu0
    %v701 = vadd.f32 %v576, %v700
    %v702 = vpop.f32.mrf.mxu0
    %v703 = vadd.f32 %v576, %v702
    %704 = vmatmul.bf16.gmra.mxu0 %v556
    %v705 = vpop.f32.mrf.mxu0
    %v706 = vadd.f32 %v576, %v705
    %v707 = vpop.f32.mrf.mxu0
    %v708 = vadd.f32 %v576, %v707
    %709 = vmatmul.bf16.gmra.mxu0 %v557
    %v710 = vpop.f32.mrf.mxu0
    %v711 = vadd.f32 %v576, %v710
    %v712 = vpop.f32.mrf.mxu0
    %v713 = vadd.f32 %v576, %v712
    %714 = vdwg.mxu0
    %v715 = vpack.c.bf16 %v636, %v636
    %v716 = vpack.c.bf16 %v638, %v638
    %v717 = vpack.c.bf16 %v641, %v641
    %v718 = vpack.c.bf16 %v643, %v643
    %v719 = vpack.c.bf16 %v646, %v646
    %v720 = vpack.c.bf16 %v648, %v648
    %v721 = vpack.c.bf16 %v651, %v651
    %v722 = vpack.c.bf16 %v653, %v653
    %v723 = vpack.c.bf16 %v656, %v656
    %v724 = vpack.c.bf16 %v658, %v658
    %v725 = vpack.c.bf16 %v661, %v661
    %v726 = vpack.c.bf16 %v663, %v663
    %v727 = vpack.c.bf16 %v666, %v666
    %v728 = vpack.c.bf16 %v668, %v668
    %v729 = vpack.c.bf16 %v671, %v671
    %v730 = vpack.c.bf16 %v673, %v673
    %v731 = vpack.c.bf16 %v676, %v676
    %v732 = vpack.c.bf16 %v678, %v678
    %v733 = vpack.c.bf16 %v681, %v681
    %v734 = vpack.c.bf16 %v683, %v683
    %v735 = vpack.c.bf16 %v686, %v686
    %v736 = vpack.c.bf16 %v688, %v688
    %v737 = vpack.c.bf16 %v691, %v691
    %v738 = vpack.c.bf16 %v693, %v693
    %v739 = vpack.c.bf16 %v696, %v696
    %v740 = vpack.c.bf16 %v698, %v698
    %v741 = vpack.c.bf16 %v701, %v701
    %v742 = vpack.c.bf16 %v703, %v703
    %v743 = vpack.c.bf16 %v706, %v706
    %v744 = vpack.c.bf16 %v708, %v708
    %v745 = vpack.c.bf16 %v711, %v711
    %v746 = vpack.c.bf16 %v713, %v713
    %v747 = vunpack.c.l.bf16 %v715
    %v748 = vunpack.c.l.bf16 %v716
    %v749 = vunpack.c.l.bf16 %v717
    %v750 = vunpack.c.l.bf16 %v718
    %v751 = vunpack.c.l.bf16 %v719
    %v752 = vunpack.c.l.bf16 %v720
    %v753 = vunpack.c.l.bf16 %v721
    %v754 = vunpack.c.l.bf16 %v722
    %v755 = vunpack.c.l.bf16 %v723
    %v756 = vunpack.c.l.bf16 %v724
    %v757 = vunpack.c.l.bf16 %v725
    %v758 = vunpack.c.l.bf16 %v726
    %v759 = vunpack.c.l.bf16 %v727
    %v760 = vunpack.c.l.bf16 %v728
    %v761 = vunpack.c.l.bf16 %v729
    %v762 = vunpack.c.l.bf16 %v730
    %v763 = vunpack.c.l.bf16 %v731
    %v764 = vunpack.c.l.bf16 %v732
    %v765 = vunpack.c.l.bf16 %v733
    %v766 = vunpack.c.l.bf16 %v734
    %v767 = vunpack.c.l.bf16 %v735
    %v768 = vunpack.c.l.bf16 %v736
    %v769 = vunpack.c.l.bf16 %v737
    %v770 = vunpack.c.l.bf16 %v738
    %v771 = vunpack.c.l.bf16 %v739
    %v772 = vunpack.c.l.bf16 %v740
    %v773 = vunpack.c.l.bf16 %v741
    %v774 = vunpack.c.l.bf16 %v742
    %v775 = vunpack.c.l.bf16 %v743
    %v776 = vunpack.c.l.bf16 %v744
    %v777 = vunpack.c.l.bf16 %v745
    %v778 = vunpack.c.l.bf16 %v746
    %v779 = vmax.f32 %v747, 0.0
    %v780 = vmax.f32 %v748, 0.0
    %v781 = vmax.f32 %v749, 0.0
    %v782 = vmax.f32 %v750, 0.0
    %v783 = vmax.f32 %v751, 0.0
    %v784 = vmax.f32 %v752, 0.0
    %v785 = vmax.f32 %v753, 0.0
    %v786 = vmax.f32 %v754, 0.0
    %v787 = vmax.f32 %v755, 0.0
    %v788 = vmax.f32 %v756, 0.0
    %v789 = vmax.f32 %v757, 0.0
    %v790 = vmax.f32 %v758, 0.0
    %v791 = vmax.f32 %v759, 0.0
    %v792 = vmax.f32 %v760, 0.0
    %v793 = vmax.f32 %v761, 0.0
    %v794 = vmax.f32 %v762, 0.0
    %v795 = vmax.f32 %v763, 0.0
    %v796 = vmax.f32 %v764, 0.0
    %v797 = vmax.f32 %v765, 0.0
    %v798 = vmax.f32 %v766, 0.0
    %v799 = vmax.f32 %v767, 0.0
    %v800 = vmax.f32 %v768, 0.0
    %v801 = vmax.f32 %v769, 0.0
    %v802 = vmax.f32 %v770, 0.0
    %v803 = vmax.f32 %v771, 0.0
    %v804 = vmax.f32 %v772, 0.0
    %v805 = vmax.f32 %v773, 0.0
    %v806 = vmax.f32 %v774, 0.0
    %v807 = vmax.f32 %v775, 0.0
    %v808 = vmax.f32 %v776, 0.0
    %v809 = vmax.f32 %v777, 0.0
    %v810 = vmax.f32 %v778, 0.0
    %v811 = vpack.c.bf16 %v780, %v779
    %v812 = vpack.c.bf16 %v782, %v781
    %v813 = vpack.c.bf16 %v784, %v783
    %v814 = vpack.c.bf16 %v786, %v785
    %v815 = vpack.c.bf16 %v788, %v787
    %v816 = vpack.c.bf16 %v790, %v789
    %v817 = vpack.c.bf16 %v792, %v791
    %v818 = vpack.c.bf16 %v794, %v793
    %v819 = vpack.c.bf16 %v796, %v795
    %v820 = vpack.c.bf16 %v798, %v797
    %v821 = vpack.c.bf16 %v800, %v799
    %v822 = vpack.c.bf16 %v802, %v801
    %v823 = vpack.c.bf16 %v804, %v803
    %v824 = vpack.c.bf16 %v806, %v805
    %v825 = vpack.c.bf16 %v808, %v807
    %v826 = vpack.c.bf16 %v810, %v809
    %v827 = vld [vmem:[%s6] sm:$0xf]
    %v828 = vld [vmem:[%s6 + $0x4] sm:$0xf]
    %v829 = vld [vmem:[%s6 + $0x8] sm:$0xf]
    %v830 = vld [vmem:[%s6 + $0xc] sm:$0xf]
    %v831 = vld [vmem:[%s6 + $0x10] sm:$0xf]
    %v832 = vld [vmem:[%s6 + $0x14] sm:$0xf]
    %v833 = vld [vmem:[%s6 + $0x18] sm:$0xf]
    %v834 = vld [vmem:[%s6 + $0x1c] sm:$0xf]
    %v835 = vld [vmem:[%s6 + $0x20] sm:$0xf]
    %v836 = vld [vmem:[%s6 + $0x24] sm:$0xf]
    %v837 = vld [vmem:[%s6 + $0x28] sm:$0xf]
    %v838 = vld [vmem:[%s6 + $0x2c] sm:$0xf]
    %v839 = vld [vmem:[%s6 + $0x30] sm:$0xf]
    %v840 = vld [vmem:[%s6 + $0x34] sm:$0xf]
    %v841 = vld [vmem:[%s6 + $0x38] sm:$0xf]
    %v842 = vld [vmem:[%s6 + $0x3c] sm:$0xf]
    %v843 = vld [vmem:[%s7] sm:$0x1]
    %v845 = vperm.slane %v843, 0
    %v863 = vunpack.c.l.b16 %v827
    %v864 = vunpack.c.l.b16 %v828
    %v865 = vunpack.c.l.b16 %v829
    %v866 = vunpack.c.l.b16 %v830
    %v867 = vunpack.c.l.b16 %v831
    %v868 = vunpack.c.l.b16 %v832
    %v869 = vunpack.c.l.b16 %v833
    %v870 = vunpack.c.l.b16 %v834
    %v871 = vunpack.c.l.b16 %v835
    %v872 = vunpack.c.l.b16 %v836
    %v873 = vunpack.c.l.b16 %v837
    %v874 = vunpack.c.l.b16 %v838
    %v875 = vunpack.c.l.b16 %v839
    %v876 = vunpack.c.l.b16 %v840
    %v877 = vunpack.c.l.b16 %v841
    %v878 = vunpack.c.l.b16 %v842
    %v879 = vpack.c.b16 %v864, %v863
    %v880 = vpack.c.b16 %v866, %v865
    %v881 = vpack.c.b16 %v868, %v867
    %v882 = vpack.c.b16 %v870, %v869
    %v883 = vpack.c.b16 %v872, %v871
    %v884 = vpack.c.b16 %v874, %v873
    %v885 = vpack.c.b16 %v876, %v875
    %v886 = vpack.c.b16 %v878, %v877
    %895 = vmatpush.bf16.msra.mxu0 %v886
    %896 = vmatpush.bf16.msra.mxu0 %v885
    %897 = vmatpush.bf16.msra.mxu0 %v884
    %898 = vmatpush.bf16.msra.mxu0 %v883
    %899 = vmatpush.bf16.msra.mxu0 %v882
    %900 = vmatpush.bf16.msra.mxu0 %v881
    %901 = vmatpush.bf16.msra.mxu0 %v880
    %902 = vmatpush.bf16.msra.mxu0 %v879
    %903 = vmatmul.bf16.gmra.mxu0 %v811
    %v904 = vpop.f32.mrf.mxu0
    %v905 = vadd.f32 %v845, %v904
    %v906 = vpop.f32.mrf.mxu0
    %v907 = vadd.f32 %v845, %v906
    %908 = vmatmul.bf16.gmra.mxu0 %v812
    %v909 = vpop.f32.mrf.mxu0
    %v910 = vadd.f32 %v845, %v909
    %v911 = vpop.f32.mrf.mxu0
    %v912 = vadd.f32 %v845, %v911
    %913 = vmatmul.bf16.gmra.mxu0 %v813
    %v914 = vpop.f32.mrf.mxu0
    %v915 = vadd.f32 %v845, %v914
    %v916 = vpop.f32.mrf.mxu0
    %v917 = vadd.f32 %v845, %v916
    %918 = vmatmul.bf16.gmra.mxu0 %v814
    %v919 = vpop.f32.mrf.mxu0
    %v920 = vadd.f32 %v845, %v919
    %v921 = vpop.f32.mrf.mxu0
    %v922 = vadd.f32 %v845, %v921
    %923 = vmatmul.bf16.gmra.mxu0 %v815
    %v924 = vpop.f32.mrf.mxu0
    %v925 = vadd.f32 %v845, %v924
    %v926 = vpop.f32.mrf.mxu0
    %v927 = vadd.f32 %v845, %v926
    %928 = vmatmul.bf16.gmra.mxu0 %v816
    %v929 = vpop.f32.mrf.mxu0
    %v930 = vadd.f32 %v845, %v929
    %v931 = vpop.f32.mrf.mxu0
    %v932 = vadd.f32 %v845, %v931
    %933 = vmatmul.bf16.gmra.mxu0 %v817
    %v934 = vpop.f32.mrf.mxu0
    %v935 = vadd.f32 %v845, %v934
    %v936 = vpop.f32.mrf.mxu0
    %v937 = vadd.f32 %v845, %v936
    %938 = vmatmul.bf16.gmra.mxu0 %v818
    %v939 = vpop.f32.mrf.mxu0
    %v940 = vadd.f32 %v845, %v939
    %v941 = vpop.f32.mrf.mxu0
    %v942 = vadd.f32 %v845, %v941
    %943 = vmatmul.bf16.gmra.mxu0 %v819
    %v944 = vpop.f32.mrf.mxu0
    %v945 = vadd.f32 %v845, %v944
    %v946 = vpop.f32.mrf.mxu0
    %v947 = vadd.f32 %v845, %v946
    %948 = vmatmul.bf16.gmra.mxu0 %v820
    %v949 = vpop.f32.mrf.mxu0
    %v950 = vadd.f32 %v845, %v949
    %v951 = vpop.f32.mrf.mxu0
    %v952 = vadd.f32 %v845, %v951
    %953 = vmatmul.bf16.gmra.mxu0 %v821
    %v954 = vpop.f32.mrf.mxu0
    %v955 = vadd.f32 %v845, %v954
    %v956 = vpop.f32.mrf.mxu0
    %v957 = vadd.f32 %v845, %v956
    %958 = vmatmul.bf16.gmra.mxu0 %v822
    %v959 = vpop.f32.mrf.mxu0
    %v960 = vadd.f32 %v845, %v959
    %v961 = vpop.f32.mrf.mxu0
    %v962 = vadd.f32 %v845, %v961
    %963 = vmatmul.bf16.gmra.mxu0 %v823
    %v964 = vpop.f32.mrf.mxu0
    %v965 = vadd.f32 %v845, %v964
    %v966 = vpop.f32.mrf.mxu0
    %v967 = vadd.f32 %v845, %v966
    %968 = vmatmul.bf16.gmra.mxu0 %v824
    %v969 = vpop.f32.mrf.mxu0
    %v970 = vadd.f32 %v845, %v969
    %v971 = vpop.f32.mrf.mxu0
    %v972 = vadd.f32 %v845, %v971
    %973 = vmatmul.bf16.gmra.mxu0 %v825
    %v974 = vpop.f32.mrf.mxu0
    %v975 = vadd.f32 %v845, %v974
    %v976 = vpop.f32.mrf.mxu0
    %v977 = vadd.f32 %v845, %v976
    %978 = vmatmul.bf16.gmra.mxu0 %v826
    %v979 = vpop.f32.mrf.mxu0
    %v980 = vadd.f32 %v845, %v979
    %v981 = vpop.f32.mrf.mxu0
    %v982 = vadd.f32 %v845, %v981
    %983 = vdwg.mxu0
    %984 = vst [vmem:[#allocation2] sm:$0xff] %v905
    %985 = vst [vmem:[#allocation2 + $0x8] sm:$0xff] %v907
    %986 = vst [vmem:[#allocation2 + $0x10] sm:$0xff] %v910
    %987 = vst [vmem:[#allocation2 + $0x18] sm:$0xff] %v912
    %988 = vst [vmem:[#allocation2 + $0x20] sm:$0xff] %v915
    %989 = vst [vmem:[#allocation2 + $0x28] sm:$0xff] %v917
    %990 = vst [vmem:[#allocation2 + $0x30] sm:$0xff] %v920
    %991 = vst [vmem:[#allocation2 + $0x38] sm:$0xff] %v922
    %992 = vst [vmem:[#allocation2 + $0x40] sm:$0xff] %v925
    %993 = vst [vmem:[#allocation2 + $0x48] sm:$0xff] %v927
    %994 = vst [vmem:[#allocation2 + $0x50] sm:$0xff] %v930
    %995 = vst [vmem:[#allocation2 + $0x58] sm:$0xff] %v932
    %996 = vst [vmem:[#allocation2 + $0x60] sm:$0xff] %v935
    %997 = vst [vmem:[#allocation2 + $0x68] sm:$0xff] %v937
    %998 = vst [vmem:[#allocation2 + $0x70] sm:$0xff] %v940
    %999 = vst [vmem:[#allocation2 + $0x78] sm:$0xff] %v942
    %1000 = vst [vmem:[#allocation2 + $0x80] sm:$0xff] %v945
    %1001 = vst [vmem:[#allocation2 + $0x88] sm:$0xff] %v947
    %1002 = vst [vmem:[#allocation2 + $0x90] sm:$0xff] %v950
    %1003 = vst [vmem:[#allocation2 + $0x98] sm:$0xff] %v952
    %1004 = vst [vmem:[#allocation2 + $0xa0] sm:$0xff] %v955
    %1005 = vst [vmem:[#allocation2 + $0xa8] sm:$0xff] %v957
    %1006 = vst [vmem:[#allocation2 + $0xb0] sm:$0xff] %v960
    %1007 = vst [vmem:[#allocation2 + $0xb8] sm:$0xff] %v962
    %1008 = vst [vmem:[#allocation2 + $0xc0] sm:$0xff] %v965
    %1009 = vst [vmem:[#allocation2 + $0xc8] sm:$0xff] %v967
    %1010 = vst [vmem:[#allocation2 + $0xd0] sm:$0xff] %v970
    %1011 = vst [vmem:[#allocation2 + $0xd8] sm:$0xff] %v972
    %1012 = vst [vmem:[#allocation2 + $0xe0] sm:$0xff] %v975
    %1013 = vst [vmem:[#allocation2 + $0xe8] sm:$0xff] %v977
    %1014 = vst [vmem:[#allocation2 + $0xf0] sm:$0xff] %v980
    %1015 = vst [vmem:[#allocation2 + $0xf8] sm:$0xff] %v982
    // Predicated region
    $region34: #{tpu_custom_call.1} parent=1 // pred_check
      _
    $region35: #{tpu_custom_call.1} parent=1 // pred_check_branch
      %1017 = sbr.rel (0) target = $region37
    $region36: #{tpu_custom_call.1} parent=1 // pred_region
      %1019 = vsyncadd [#allocation3], 0
      %s1020 = sshll.u32 [#allocation2], 4
      %s1021 = int_to_ptr.vmem [resolvable:$true] %s1020
      %s1022 = sshll.u32 %s8, 4
      %s1023 = int_to_ptr.hbm [resolvable:$true] %s1022
      %1028 = dma.vmem_to_hbm [thread:$0]  %s1021, 4096, %s1023, [#allocation3], 128, 128, 8
    $region37: #{tpu_custom_call.1} parent=1 // pred_fallthru
      _
    // Predicated region
    $region38: #{tpu_custom_call.1} parent=1 // pred_check
      _
    $region39: #{tpu_custom_call.1} parent=1 // pred_check_branch
      %1030 = sbr.rel (0) target = $region41
    $region40: #{tpu_custom_call.1} parent=1 // pred_region
      %1032 = dma.done [#allocation3], 4096
    $region41: #{tpu_custom_call.1} parent=1 // pred_fallthru
      _
    %1033 = vsyncpa [#allocation3], 1

// kernel: tpu_custom_call.1
$region0: #{tpu_custom_call.1}
  #allocation0 [shape = 'u32[]', space=smem, size = 0x4, offset = 0x4, fixed_abs, tag = 'smem constant byte address 0x4 - core index']
  #allocation1 [shape = 'u32[72,128]{1,0:T(1,128)}', space=vmem, size = 0x9000, scoped, tag = 'internal scratch']
  %s0 = inlined_call_operand.vmem [shape: f32[256,32], index: 0, kind: input, shape index: {}]
  %s1 = inlined_call_operand.vmem [shape: f32[256,32], index: 1, kind: input, shape index: {}]
  %s2 = inlined_call_operand.vmem [shape: bf16[64,128], index: 2, kind: input, shape index: {}]
  %s3 = inlined_call_operand.vmem [shape: f32[1,128], index: 3, kind: input, shape index: {}]
  %s4 = inlined_call_operand.vmem [shape: bf16[128,128], index: 4, kind: input, shape index: {}]
  %s5 = inlined_call_operand.vmem [shape: f32[1,128], index: 5, kind: input, shape index: {}]
  %s6 = inlined_call_operand.vmem [shape: bf16[128,128], index: 6, kind: input, shape index: {}]
  %s7 = inlined_call_operand.vmem [shape: f32[1,128], index: 7, kind: input, shape index: {}]
  %s8 = inlined_call_operand.hbm [shape: f32[256,128], index: 8, kind: output, shape index: {}]
  %s9 = sld [smem:[#allocation0]]
  $region42: #{tpu_custom_call.1} parent=0
    _
  %s11 = ssub.s32 1, %s9
  %s12 = scalar_select 0, %s11, %s9
  $region1: #{tpu_custom_call.1} parent=0
    #allocation2 [shape = 'u8[131072]{0}', space=vmem, size = 0x20000, scoped, tag = 'output window, operand 0, single buffered']
    #allocation3 [shape = 's32[1]{0}', space=sflag, size = 0x4, scoped, tag = 'scoped memory for tpu_custom_call.1']
    %13 = vsyncpa [#allocation3], 0
    // Predicated region
    $region2: #{tpu_custom_call.1} parent=1 // pred_check
      _
    $region3: #{tpu_custom_call.1} parent=1 // pred_check_branch
      %15 = sbr.rel (0) target = $region5
    $region4: #{tpu_custom_call.1} parent=1 // pred_region
      _
    $region5: #{tpu_custom_call.1} parent=1 // pred_fallthru
      _
    // Predicated region
    $region6: #{tpu_custom_call.1} parent=1 // pred_check
      _
    $region7: #{tpu_custom_call.1} parent=1 // pred_check_branch
      %17 = sbr.rel (0) target = $region9
    $region8: #{tpu_custom_call.1} parent=1 // pred_region
      _
    $region9: #{tpu_custom_call.1} parent=1 // pred_fallthru
      _
    // Predicated region
    $region10: #{tpu_custom_call.1} parent=1 // pred_check
      _
    $region11: #{tpu_custom_call.1} parent=1 // pred_check_branch
      %19 = sbr.rel (0) target = $region13
    $region12: #{tpu_custom_call.1} parent=1 // pred_region
      _
    $region13: #{tpu_custom_call.1} parent=1 // pred_fallthru
      _
    // Predicated region
    $region14: #{tpu_custom_call.1} parent=1 // pred_check
      _
    $region15: #{tpu_custom_call.1} parent=1 // pred_check_branch
      %21 = sbr.rel (0) target = $region17
    $region16: #{tpu_custom_call.1} parent=1 // pred_region
      _
    $region17: #{tpu_custom_call.1} parent=1 // pred_fallthru
      _
    // Predicated region
    $region18: #{tpu_custom_call.1} parent=1 // pred_check
      _
    $region19: #{tpu_custom_call.1} parent=1 // pred_check_branch
      %23 = sbr.rel (0) target = $region21
    $region20: #{tpu_custom_call.1} parent=1 // pred_region
      _
    $region21: #{tpu_custom_call.1} parent=1 // pred_fallthru
      _
    // Predicated region
    $region22: #{tpu_custom_call.1} parent=1 // pred_check
      _
    $region23: #{tpu_custom_call.1} parent=1 // pred_check_branch
      %25 = sbr.rel (0) target = $region25
    $region24: #{tpu_custom_call.1} parent=1 // pred_region
      _
    $region25: #{tpu_custom_call.1} parent=1 // pred_fallthru
      _
    // Predicated region
    $region26: #{tpu_custom_call.1} parent=1 // pred_check
      _
    $region27: #{tpu_custom_call.1} parent=1 // pred_check_branch
      %27 = sbr.rel (0) target = $region29
    $region28: #{tpu_custom_call.1} parent=1 // pred_region
      _
    $region29: #{tpu_custom_call.1} parent=1 // pred_fallthru
      _
    // Predicated region
    $region30: #{tpu_custom_call.1} parent=1 // pred_check
      _
    $region31: #{tpu_custom_call.1} parent=1 // pred_check_branch
      %29 = sbr.rel (0) target = $region33
    $region32: #{tpu_custom_call.1} parent=1 // pred_region
      _
    $region33: #{tpu_custom_call.1} parent=1 // pred_fallthru
      _
    %v31 = vld [vmem:[%s0] sm:$0xff]
    %v32 = vld [vmem:[%s0 + $0x8] sm:$0xff]
    %v33 = vld [vmem:[%s0 + $0x10] sm:$0xff]
    %v34 = vld [vmem:[%s0 + $0x18] sm:$0xff]
    %v35 = vld [vmem:[%s0 + $0x20] sm:$0xff]
    %v36 = vld [vmem:[%s0 + $0x28] sm:$0xff]
    %v37 = vld [vmem:[%s0 + $0x30] sm:$0xff]
    %v38 = vld [vmem:[%s0 + $0x38] sm:$0xff]
    %v39 = vld [vmem:[%s0 + $0x40] sm:$0xff]
    %v40 = vld [vmem:[%s0 + $0x48] sm:$0xff]
    %v41 = vld [vmem:[%s0 + $0x50] sm:$0xff]
    %v42 = vld [vmem:[%s0 + $0x58] sm:$0xff]
    %v43 = vld [vmem:[%s0 + $0x60] sm:$0xff]
    %v44 = vld [vmem:[%s0 + $0x68] sm:$0xff]
    %v45 = vld [vmem:[%s0 + $0x70] sm:$0xff]
    %v46 = vld [vmem:[%s0 + $0x78] sm:$0xff]
    %v47 = vld [vmem:[%s0 + $0x80] sm:$0xff]
    %v48 = vld [vmem:[%s0 + $0x88] sm:$0xff]
    %v49 = vld [vmem:[%s0 + $0x90] sm:$0xff]
    %v50 = vld [vmem:[%s0 + $0x98] sm:$0xff]
    %v51 = vld [vmem:[%s0 + $0xa0] sm:$0xff]
    %v52 = vld [vmem:[%s0 + $0xa8] sm:$0xff]
    %v53 = vld [vmem:[%s0 + $0xb0] sm:$0xff]
    %v54 = vld [vmem:[%s0 + $0xb8] sm:$0xff]
    %v55 = vld [vmem:[%s0 + $0xc0] sm:$0xff]
    %v56 = vld [vmem:[%s0 + $0xc8] sm:$0xff]
    %v57 = vld [vmem:[%s0 + $0xd0] sm:$0xff]
    %v58 = vld [vmem:[%s0 + $0xd8] sm:$0xff]
    %v59 = vld [vmem:[%s0 + $0xe0] sm:$0xff]
    %v60 = vld [vmem:[%s0 + $0xe8] sm:$0xff]
    %v61 = vld [vmem:[%s0 + $0xf0] sm:$0xff]
    %v62 = vld [vmem:[%s0 + $0xf8] sm:$0xff]
    %v63 = vld [vmem:[%s1] sm:$0xff]
    %v64 = vld [vmem:[%s1 + $0x8] sm:$0xff]
    %v65 = vld [vmem:[%s1 + $0x10] sm:$0xff]
    %v66 = vld [vmem:[%s1 + $0x18] sm:$0xff]
    %v67 = vld [vmem:[%s1 + $0x20] sm:$0xff]
    %v68 = vld [vmem:[%s1 + $0x28] sm:$0xff]
    %v69 = vld [vmem:[%s1 + $0x30] sm:$0xff]
    %v70 = vld [vmem:[%s1 + $0x38] sm:$0xff]
    %v71 = vld [vmem:[%s1 + $0x40] sm:$0xff]
    %v72 = vld [vmem:[%s1 + $0x48] sm:$0xff]
    %v73 = vld [vmem:[%s1 + $0x50] sm:$0xff]
    %v74 = vld [vmem:[%s1 + $0x58] sm:$0xff]
    %v75 = vld [vmem:[%s1 + $0x60] sm:$0xff]
    %v76 = vld [vmem:[%s1 + $0x68] sm:$0xff]
    %v77 = vld [vmem:[%s1 + $0x70] sm:$0xff]
    %v78 = vld [vmem:[%s1 + $0x78] sm:$0xff]
    %v79 = vld [vmem:[%s1 + $0x80] sm:$0xff]
    %v80 = vld [vmem:[%s1 + $0x88] sm:$0xff]
    %v81 = vld [vmem:[%s1 + $0x90] sm:$0xff]
    %v82 = vld [vmem:[%s1 + $0x98] sm:$0xff]
    %v83 = vld [vmem:[%s1 + $0xa0] sm:$0xff]
    %v84 = vld [vmem:[%s1 + $0xa8] sm:$0xff]
    %v85 = vld [vmem:[%s1 + $0xb0] sm:$0xff]
    %v86 = vld [vmem:[%s1 + $0xb8] sm:$0xff]
    %v87 = vld [vmem:[%s1 + $0xc0] sm:$0xff]
    %v88 = vld [vmem:[%s1 + $0xc8] sm:$0xff]
    %v89 = vld [vmem:[%s1 + $0xd0] sm:$0xff]
    %v90 = vld [vmem:[%s1 + $0xd8] sm:$0xff]
    %v91 = vld [vmem:[%s1 + $0xe0] sm:$0xff]
    %v92 = vld [vmem:[%s1 + $0xe8] sm:$0xff]
    %v93 = vld [vmem:[%s1 + $0xf0] sm:$0xff]
    %v94 = vld [vmem:[%s1 + $0xf8] sm:$0xff]
    %127 = vrot.lane.b32.xlu0 %v63, 32
    %v128 = vpop.permute.xlu0 %127
    %129 = vrot.lane.b32.xlu0 %v64, 32
    %v130 = vpop.permute.xlu0 %129
    %131 = vrot.lane.b32.xlu0 %v65, 32
    %v132 = vpop.permute.xlu0 %131
    %133 = vrot.lane.b32.xlu0 %v66, 32
    %v134 = vpop.permute.xlu0 %133
    %135 = vrot.lane.b32.xlu0 %v67, 32
    %v136 = vpop.permute.xlu0 %135
    %137 = vrot.lane.b32.xlu0 %v68, 32
    %v138 = vpop.permute.xlu0 %137
    %139 = vrot.lane.b32.xlu0 %v69, 32
    %v140 = vpop.permute.xlu0 %139
    %141 = vrot.lane.b32.xlu0 %v70, 32
    %v142 = vpop.permute.xlu0 %141
    %143 = vrot.lane.b32.xlu0 %v71, 32
    %v144 = vpop.permute.xlu0 %143
    %145 = vrot.lane.b32.xlu0 %v72, 32
    %v146 = vpop.permute.xlu0 %145
    %147 = vrot.lane.b32.xlu0 %v73, 32
    %v148 = vpop.permute.xlu0 %147
    %149 = vrot.lane.b32.xlu0 %v74, 32
    %v150 = vpop.permute.xlu0 %149
    %151 = vrot.lane.b32.xlu0 %v75, 32
    %v152 = vpop.permute.xlu0 %151
    %153 = vrot.lane.b32.xlu0 %v76, 32
    %v154 = vpop.permute.xlu0 %153
    %155 = vrot.lane.b32.xlu0 %v77, 32
    %v156 = vpop.permute.xlu0 %155
    %157 = vrot.lane.b32.xlu0 %v78, 32
    %v158 = vpop.permute.xlu0 %157
    %159 = vrot.lane.b32.xlu0 %v79, 32
    %v160 = vpop.permute.xlu0 %159
    %161 = vrot.lane.b32.xlu0 %v80, 32
    %v162 = vpop.permute.xlu0 %161
    %163 = vrot.lane.b32.xlu0 %v81, 32
    %v164 = vpop.permute.xlu0 %163
    %165 = vrot.lane.b32.xlu0 %v82, 32
    %v166 = vpop.permute.xlu0 %165
    %167 = vrot.lane.b32.xlu0 %v83, 32
    %v168 = vpop.permute.xlu0 %167
    %169 = vrot.lane.b32.xlu0 %v84, 32
    %v170 = vpop.permute.xlu0 %169
    %171 = vrot.lane.b32.xlu0 %v85, 32
    %v172 = vpop.permute.xlu0 %171
    %173 = vrot.lane.b32.xlu0 %v86, 32
    %v174 = vpop.permute.xlu0 %173
    %175 = vrot.lane.b32.xlu0 %v87, 32
    %v176 = vpop.permute.xlu0 %175
    %177 = vrot.lane.b32.xlu0 %v88, 32
    %v178 = vpop.permute.xlu0 %177
    %179 = vrot.lane.b32.xlu0 %v89, 32
    %v180 = vpop.permute.xlu0 %179
    %181 = vrot.lane.b32.xlu0 %v90, 32
    %v182 = vpop.permute.xlu0 %181
    %183 = vrot.lane.b32.xlu0 %v91, 32
    %v184 = vpop.permute.xlu0 %183
    %185 = vrot.lane.b32.xlu0 %v92, 32
    %v186 = vpop.permute.xlu0 %185
    %187 = vrot.lane.b32.xlu0 %v93, 32
    %v188 = vpop.permute.xlu0 %187
    %189 = vrot.lane.b32.xlu0 %v94, 32
    %v190 = vpop.permute.xlu0 %189
    %vm223 = vcmask 261120
    %v224 = vsel %vm223, %v31, %v128
    %v225 = vsel %vm223, %v32, %v130
    %v226 = vsel %vm223, %v33, %v132
    %v227 = vsel %vm223, %v34, %v134
    %v228 = vsel %vm223, %v35, %v136
    %v229 = vsel %vm223, %v36, %v138
    %v230 = vsel %vm223, %v37, %v140
    %v231 = vsel %vm223, %v38, %v142
    %v232 = vsel %vm223, %v39, %v144
    %v233 = vsel %vm223, %v40, %v146
    %v234 = vsel %vm223, %v41, %v148
    %v235 = vsel %vm223, %v42, %v150
    %v236 = vsel %vm223, %v43, %v152
    %v237 = vsel %vm223, %v44, %v154
    %v238 = vsel %vm223, %v45, %v156
    %v239 = vsel %vm223, %v46, %v158
    %v240 = vsel %vm223, %v47, %v160
    %v241 = vsel %vm223, %v48, %v162
    %v242 = vsel %vm223, %v49, %v164
    %v243 = vsel %vm223, %v50, %v166
    %v244 = vsel %vm223, %v51, %v168
    %v245 = vsel %vm223, %v52, %v170
    %v246 = vsel %vm223, %v53, %v172
    %v247 = vsel %vm223, %v54, %v174
    %v248 = vsel %vm223, %v55, %v176
    %v249 = vsel %vm223, %v56, %v178
    %v250 = vsel %vm223, %v57, %v180
    %v251 = vsel %vm223, %v58, %v182
    %v252 = vsel %vm223, %v59, %v184
    %v253 = vsel %vm223, %v60, %v186
    %v254 = vsel %vm223, %v61, %v188
    %v255 = vsel %vm223, %v62, %v190
    %v256 = vpack.c.bf16 %v225, %v224
    %v257 = vpack.c.bf16 %v227, %v226
    %v258 = vpack.c.bf16 %v229, %v228
    %v259 = vpack.c.bf16 %v231, %v230
    %v260 = vpack.c.bf16 %v233, %v232
    %v261 = vpack.c.bf16 %v235, %v234
    %v262 = vpack.c.bf16 %v237, %v236
    %v263 = vpack.c.bf16 %v239, %v238
    %v264 = vpack.c.bf16 %v241, %v240
    %v265 = vpack.c.bf16 %v243, %v242
    %v266 = vpack.c.bf16 %v245, %v244
    %v267 = vpack.c.bf16 %v247, %v246
    %v268 = vpack.c.bf16 %v249, %v248
    %v269 = vpack.c.bf16 %v251, %v250
    %v270 = vpack.c.bf16 %v253, %v252
    %v271 = vpack.c.bf16 %v255, %v254
    %v272 = vld [vmem:[%s2] sm:$0xf]
    %v273 = vld [vmem:[%s2 + $0x4] sm:$0xf]
    %v274 = vld [vmem:[%s2 + $0x8] sm:$0xf]
    %v275 = vld [vmem:[%s2 + $0xc] sm:$0xf]
    %v276 = vld [vmem:[%s2 + $0x10] sm:$0xf]
    %v277 = vld [vmem:[%s2 + $0x14] sm:$0xf]
    %v278 = vld [vmem:[%s2 + $0x18] sm:$0xf]
    %v279 = vld [vmem:[%s2 + $0x1c] sm:$0xf]
    %v280 = vld [vmem:[%s3] sm:$0x1]
    %v282 = vperm.slane %v280, 0
    %v292 = vunpack.c.l.b16 %v272
    %v293 = vunpack.c.l.b16 %v273
    %v294 = vunpack.c.l.b16 %v274
    %v295 = vunpack.c.l.b16 %v275
    %v296 = vunpack.c.l.b16 %v276
    %v297 = vunpack.c.l.b16 %v277
    %v298 = vunpack.c.l.b16 %v278
    %v299 = vunpack.c.l.b16 %v279
    %v300 = vpack.c.b16 %v293, %v292
    %v301 = vpack.c.b16 %v295, %v294
    %v302 = vpack.c.b16 %v297, %v296
    %v303 = vpack.c.b16 %v299, %v298
    %vm308 = vcmask 523264
    %v310 = vsel %vm308, %v256, 0
    %v313 = vsel %vm308, %v257, 0
    %v316 = vsel %vm308, %v258, 0
    %v319 = vsel %vm308, %v259, 0
    %v322 = vsel %vm308, %v260, 0
    %v325 = vsel %vm308, %v261, 0
    %v328 = vsel %vm308, %v262, 0
    %v331 = vsel %vm308, %v263, 0
    %v334 = vsel %vm308, %v264, 0
    %v337 = vsel %vm308, %v265, 0
    %v340 = vsel %vm308, %v266, 0
    %v343 = vsel %vm308, %v267, 0
    %v346 = vsel %vm308, %v268, 0
    %v349 = vsel %vm308, %v269, 0
    %v352 = vsel %vm308, %v270, 0
    %v355 = vsel %vm308, %v271, 0
    %357 = vmatpush.bf16.msra.mxu0 0
    %358 = vmatpush.bf16.msra.mxu0 0
    %359 = vmatpush.bf16.msra.mxu0 0
    %360 = vmatpush.bf16.msra.mxu0 0
    %361 = vmatpush.bf16.msra.mxu0 %v303
    %362 = vmatpush.bf16.msra.mxu0 %v302
    %363 = vmatpush.bf16.msra.mxu0 %v301
    %364 = vmatpush.bf16.msra.mxu0 %v300
    %365 = vmatmul.bf16.gmra.mxu0 %v310
    %v366 = vpop.f32.mrf.mxu0
    %v367 = vadd.f32 %v282, %v366
    %v368 = vpop.f32.mrf.mxu0
    %v369 = vadd.f32 %v282, %v368
    %370 = vmatmul.bf16.gmra.mxu0 %v313
    %v371 = vpop.f32.mrf.mxu0
    %v372 = vadd.f32 %v282, %v371
    %v373 = vpop.f32.mrf.mxu0
    %v374 = vadd.f32 %v282, %v373
    %375 = vmatmul.bf16.gmra.mxu0 %v316
    %v376 = vpop.f32.mrf.mxu0
    %v377 = vadd.f32 %v282, %v376
    %v378 = vpop.f32.mrf.mxu0
    %v379 = vadd.f32 %v282, %v378
    %380 = vmatmul.bf16.gmra.mxu0 %v319
    %v381 = vpop.f32.mrf.mxu0
    %v382 = vadd.f32 %v282, %v381
    %v383 = vpop.f32.mrf.mxu0
    %v384 = vadd.f32 %v282, %v383
    %385 = vmatmul.bf16.gmra.mxu0 %v322
    %v386 = vpop.f32.mrf.mxu0
    %v387 = vadd.f32 %v282, %v386
    %v388 = vpop.f32.mrf.mxu0
    %v389 = vadd.f32 %v282, %v388
    %390 = vmatmul.bf16.gmra.mxu0 %v325
    %v391 = vpop.f32.mrf.mxu0
    %v392 = vadd.f32 %v282, %v391
    %v393 = vpop.f32.mrf.mxu0
    %v394 = vadd.f32 %v282, %v393
    %395 = vmatmul.bf16.gmra.mxu0 %v328
    %v396 = vpop.f32.mrf.mxu0
    %v397 = vadd.f32 %v282, %v396
    %v398 = vpop.f32.mrf.mxu0
    %v399 = vadd.f32 %v282, %v398
    %400 = vmatmul.bf16.gmra.mxu0 %v331
    %v401 = vpop.f32.mrf.mxu0
    %v402 = vadd.f32 %v282, %v401
    %v403 = vpop.f32.mrf.mxu0
    %v404 = vadd.f32 %v282, %v403
    %405 = vmatmul.bf16.gmra.mxu0 %v334
    %v406 = vpop.f32.mrf.mxu0
    %v407 = vadd.f32 %v282, %v406
    %v408 = vpop.f32.mrf.mxu0
    %v409 = vadd.f32 %v282, %v408
    %410 = vmatmul.bf16.gmra.mxu0 %v337
    %v411 = vpop.f32.mrf.mxu0
    %v412 = vadd.f32 %v282, %v411
    %v413 = vpop.f32.mrf.mxu0
    %v414 = vadd.f32 %v282, %v413
    %415 = vmatmul.bf16.gmra.mxu0 %v340
    %v416 = vpop.f32.mrf.mxu0
    %v417 = vadd.f32 %v282, %v416
    %v418 = vpop.f32.mrf.mxu0
    %v419 = vadd.f32 %v282, %v418
    %420 = vmatmul.bf16.gmra.mxu0 %v343
    %v421 = vpop.f32.mrf.mxu0
    %v422 = vadd.f32 %v282, %v421
    %v423 = vpop.f32.mrf.mxu0
    %v424 = vadd.f32 %v282, %v423
    %425 = vmatmul.bf16.gmra.mxu0 %v346
    %v426 = vpop.f32.mrf.mxu0
    %v427 = vadd.f32 %v282, %v426
    %v428 = vpop.f32.mrf.mxu0
    %v429 = vadd.f32 %v282, %v428
    %430 = vmatmul.bf16.gmra.mxu0 %v349
    %v431 = vpop.f32.mrf.mxu0
    %v432 = vadd.f32 %v282, %v431
    %v433 = vpop.f32.mrf.mxu0
    %v434 = vadd.f32 %v282, %v433
    %435 = vmatmul.bf16.gmra.mxu0 %v352
    %v436 = vpop.f32.mrf.mxu0
    %v437 = vadd.f32 %v282, %v436
    %v438 = vpop.f32.mrf.mxu0
    %v439 = vadd.f32 %v282, %v438
    %440 = vmatmul.bf16.gmra.mxu0 %v355
    %v441 = vpop.f32.mrf.mxu0
    %v442 = vadd.f32 %v282, %v441
    %v443 = vpop.f32.mrf.mxu0
    %v444 = vadd.f32 %v282, %v443
    %445 = vdwg.mxu0
    %v446 = vpack.c.bf16 %v367, %v367
    %v447 = vpack.c.bf16 %v369, %v369
    %v448 = vpack.c.bf16 %v372, %v372
    %v449 = vpack.c.bf16 %v374, %v374
    %v450 = vpack.c.bf16 %v377, %v377
    %v451 = vpack.c.bf16 %v379, %v379
    %v452 = vpack.c.bf16 %v382, %v382
    %v453 = vpack.c.bf16 %v384, %v384
    %v454 = vpack.c.bf16 %v387, %v387
    %v455 = vpack.c.bf16 %v389, %v389
    %v456 = vpack.c.bf16 %v392, %v392
    %v457 = vpack.c.bf16 %v394, %v394
    %v458 = vpack.c.bf16 %v397, %v397
    %v459 = vpack.c.bf16 %v399, %v399
    %v460 = vpack.c.bf16 %v402, %v402
    %v461 = vpack.c.bf16 %v404, %v404
    %v462 = vpack.c.bf16 %v407, %v407
    %v463 = vpack.c.bf16 %v409, %v409
    %v464 = vpack.c.bf16 %v412, %v412
    %v465 = vpack.c.bf16 %v414, %v414
    %v466 = vpack.c.bf16 %v417, %v417
    %v467 = vpack.c.bf16 %v419, %v419
    %v468 = vpack.c.bf16 %v422, %v422
    %v469 = vpack.c.bf16 %v424, %v424
    %v470 = vpack.c.bf16 %v427, %v427
    %v471 = vpack.c.bf16 %v429, %v429
    %v472 = vpack.c.bf16 %v432, %v432
    %v473 = vpack.c.bf16 %v434, %v434
    %v474 = vpack.c.bf16 %v437, %v437
    %v475 = vpack.c.bf16 %v439, %v439
    %v476 = vpack.c.bf16 %v442, %v442
    %v477 = vpack.c.bf16 %v444, %v444
    %v478 = vunpack.c.l.bf16 %v446
    %v479 = vunpack.c.l.bf16 %v447
    %v480 = vunpack.c.l.bf16 %v448
    %v481 = vunpack.c.l.bf16 %v449
    %v482 = vunpack.c.l.bf16 %v450
    %v483 = vunpack.c.l.bf16 %v451
    %v484 = vunpack.c.l.bf16 %v452
    %v485 = vunpack.c.l.bf16 %v453
    %v486 = vunpack.c.l.bf16 %v454
    %v487 = vunpack.c.l.bf16 %v455
    %v488 = vunpack.c.l.bf16 %v456
    %v489 = vunpack.c.l.bf16 %v457
    %v490 = vunpack.c.l.bf16 %v458
    %v491 = vunpack.c.l.bf16 %v459
    %v492 = vunpack.c.l.bf16 %v460
    %v493 = vunpack.c.l.bf16 %v461
    %v494 = vunpack.c.l.bf16 %v462
    %v495 = vunpack.c.l.bf16 %v463
    %v496 = vunpack.c.l.bf16 %v464
    %v497 = vunpack.c.l.bf16 %v465
    %v498 = vunpack.c.l.bf16 %v466
    %v499 = vunpack.c.l.bf16 %v467
    %v500 = vunpack.c.l.bf16 %v468
    %v501 = vunpack.c.l.bf16 %v469
    %v502 = vunpack.c.l.bf16 %v470
    %v503 = vunpack.c.l.bf16 %v471
    %v504 = vunpack.c.l.bf16 %v472
    %v505 = vunpack.c.l.bf16 %v473
    %v506 = vunpack.c.l.bf16 %v474
    %v507 = vunpack.c.l.bf16 %v475
    %v508 = vunpack.c.l.bf16 %v476
    %v509 = vunpack.c.l.bf16 %v477
    %v510 = vmax.f32 %v478, 0.0
    %v511 = vmax.f32 %v479, 0.0
    %v512 = vmax.f32 %v480, 0.0
    %v513 = vmax.f32 %v481, 0.0
    %v514 = vmax.f32 %v482, 0.0
    %v515 = vmax.f32 %v483, 0.0
    %v516 = vmax.f32 %v484, 0.0
    %v517 = vmax.f32 %v485, 0.0
    %v518 = vmax.f32 %v486, 0.0
    %v519 = vmax.f32 %v487, 0.0
    %v520 = vmax.f32 %v488, 0.0
    %v521 = vmax.f32 %v489, 0.0
    %v522 = vmax.f32 %v490, 0.0
    %v523 = vmax.f32 %v491, 0.0
    %v524 = vmax.f32 %v492, 0.0
    %v525 = vmax.f32 %v493, 0.0
    %v526 = vmax.f32 %v494, 0.0
    %v527 = vmax.f32 %v495, 0.0
    %v528 = vmax.f32 %v496, 0.0
    %v529 = vmax.f32 %v497, 0.0
    %v530 = vmax.f32 %v498, 0.0
    %v531 = vmax.f32 %v499, 0.0
    %v532 = vmax.f32 %v500, 0.0
    %v533 = vmax.f32 %v501, 0.0
    %v534 = vmax.f32 %v502, 0.0
    %v535 = vmax.f32 %v503, 0.0
    %v536 = vmax.f32 %v504, 0.0
    %v537 = vmax.f32 %v505, 0.0
    %v538 = vmax.f32 %v506, 0.0
    %v539 = vmax.f32 %v507, 0.0
    %v540 = vmax.f32 %v508, 0.0
    %v541 = vmax.f32 %v509, 0.0
    %v542 = vpack.c.bf16 %v511, %v510
    %v543 = vpack.c.bf16 %v513, %v512
    %v544 = vpack.c.bf16 %v515, %v514
    %v545 = vpack.c.bf16 %v517, %v516
    %v546 = vpack.c.bf16 %v519, %v518
    %v547 = vpack.c.bf16 %v521, %v520
    %v548 = vpack.c.bf16 %v523, %v522
    %v549 = vpack.c.bf16 %v525, %v524
    %v550 = vpack.c.bf16 %v527, %v526
    %v551 = vpack.c.bf16 %v529, %v528
    %v552 = vpack.c.bf16 %v531, %v530
    %v553 = vpack.c.bf16 %v533, %v532
    %v554 = vpack.c.bf16 %v535, %v534
    %v555 = vpack.c.bf16 %v537, %v536
    %v556 = vpack.c.bf16 %v539, %v538
    %v557 = vpack.c.bf16 %v541, %v540
    %v558 = vld [vmem:[%s4] sm:$0xf]
    %v559 = vld [vmem:[%s4 + $0x4] sm:$0xf]
    %v560 = vld [vmem:[%s4 + $0x8] sm:$0xf]
    %v561 = vld [vmem:[%s4 + $0xc] sm:$0xf]
    %v562 = vld [vmem:[%s4 + $0x10] sm:$0xf]
    %v563 = vld [vmem:[%s4 + $0x14] sm:$0xf]
    %v564 = vld [vmem:[%s4 + $0x18] sm:$0xf]
    %v565 = vld [vmem:[%s4 + $0x1c] sm:$0xf]
    %v566 = vld [vmem:[%s4 + $0x20] sm:$0xf]
    %v567 = vld [vmem:[%s4 + $0x24] sm:$0xf]
    %v568 = vld [vmem:[%s4 + $0x28] sm:$0xf]
    %v569 = vld [vmem:[%s4 + $0x2c] sm:$0xf]
    %v570 = vld [vmem:[%s4 + $0x30] sm:$0xf]
    %v571 = vld [vmem:[%s4 + $0x34] sm:$0xf]
    %v572 = vld [vmem:[%s4 + $0x38] sm:$0xf]
    %v573 = vld [vmem:[%s4 + $0x3c] sm:$0xf]
    %v574 = vld [vmem:[%s5] sm:$0x1]
    %v576 = vperm.slane %v574, 0
    %v594 = vunpack.c.l.b16 %v558
    %v595 = vunpack.c.l.b16 %v559
    %v596 = vunpack.c.l.b16 %v560
    %v597 = vunpack.c.l.b16 %v561
    %v598 = vunpack.c.l.b16 %v562
    %v599 = vunpack.c.l.b16 %v563
    %v600 = vunpack.c.l.b16 %v564
    %v601 = vunpack.c.l.b16 %v565
    %v602 = vunpack.c.l.b16 %v566
    %v603 = vunpack.c.l.b16 %v567
    %v604 = vunpack.c.l.b16 %v568
    %v605 = vunpack.c.l.b16 %v569
    %v606 = vunpack.c.l.b16 %v570
    %v607 = vunpack.c.l.b16 %v571
    %v608 = vunpack.c.l.b16 %v572
    %v609 = vunpack.c.l.b16 %v573
    %v610 = vpack.c.b16 %v595, %v594
    %v611 = vpack.c.b16 %v597, %v596
    %v612 = vpack.c.b16 %v599, %v598
    %v613 = vpack.c.b16 %v601, %v600
    %v614 = vpack.c.b16 %v603, %v602
    %v615 = vpack.c.b16 %v605, %v604
    %v616 = vpack.c.b16 %v607, %v606
    %v617 = vpack.c.b16 %v609, %v608
    %626 = vmatpush.bf16.msra.mxu0 %v617
    %627 = vmatpush.bf16.msra.mxu0 %v616
    %628 = vmatpush.bf16.msra.mxu0 %v615
    %629 = vmatpush.bf16.msra.mxu0 %v614
    %630 = vmatpush.bf16.msra.mxu0 %v613
    %631 = vmatpush.bf16.msra.mxu0 %v612
    %632 = vmatpush.bf16.msra.mxu0 %v611
    %633 = vmatpush.bf16.msra.mxu0 %v610
    %634 = vmatmul.bf16.gmra.mxu0 %v542
    %v635 = vpop.f32.mrf.mxu0
    %v636 = vadd.f32 %v576, %v635
    %v637 = vpop.f32.mrf.mxu0
    %v638 = vadd.f32 %v576, %v637
    %639 = vmatmul.bf16.gmra.mxu0 %v543
    %v640 = vpop.f32.mrf.mxu0
    %v641 = vadd.f32 %v576, %v640
    %v642 = vpop.f32.mrf.mxu0
    %v643 = vadd.f32 %v576, %v642
    %644 = vmatmul.bf16.gmra.mxu0 %v544
    %v645 = vpop.f32.mrf.mxu0
    %v646 = vadd.f32 %v576, %v645
    %v647 = vpop.f32.mrf.mxu0
    %v648 = vadd.f32 %v576, %v647
    %649 = vmatmul.bf16.gmra.mxu0 %v545
    %v650 = vpop.f32.mrf.mxu0
    %v651 = vadd.f32 %v576, %v650
    %v652 = vpop.f32.mrf.mxu0
    %v653 = vadd.f32 %v576, %v652
    %654 = vmatmul.bf16.gmra.mxu0 %v546
    %v655 = vpop.f32.mrf.mxu0
    %v656 = vadd.f32 %v576, %v655
    %v657 = vpop.f32.mrf.mxu0
    %v658 = vadd.f32 %v576, %v657
    %659 = vmatmul.bf16.gmra.mxu0 %v547
    %v660 = vpop.f32.mrf.mxu0
    %v661 = vadd.f32 %v576, %v660
    %v662 = vpop.f32.mrf.mxu0
    %v663 = vadd.f32 %v576, %v662
    %664 = vmatmul.bf16.gmra.mxu0 %v548
    %v665 = vpop.f32.mrf.mxu0
    %v666 = vadd.f32 %v576, %v665
    %v667 = vpop.f32.mrf.mxu0
    %v668 = vadd.f32 %v576, %v667
    %669 = vmatmul.bf16.gmra.mxu0 %v549
    %v670 = vpop.f32.mrf.mxu0
    %v671 = vadd.f32 %v576, %v670
    %v672 = vpop.f32.mrf.mxu0
    %v673 = vadd.f32 %v576, %v672
    %674 = vmatmul.bf16.gmra.mxu0 %v550
    %v675 = vpop.f32.mrf.mxu0
    %v676 = vadd.f32 %v576, %v675
    %v677 = vpop.f32.mrf.mxu0
    %v678 = vadd.f32 %v576, %v677
    %679 = vmatmul.bf16.gmra.mxu0 %v551
    %v680 = vpop.f32.mrf.mxu0
    %v681 = vadd.f32 %v576, %v680
    %v682 = vpop.f32.mrf.mxu0
    %v683 = vadd.f32 %v576, %v682
    %684 = vmatmul.bf16.gmra.mxu0 %v552
    %v685 = vpop.f32.mrf.mxu0
    %v686 = vadd.f32 %v576, %v685
    %v687 = vpop.f32.mrf.mxu0
    %v688 = vadd.f32 %v576, %v687
    %689 = vmatmul.bf16.gmra.mxu0 %v553
    %v690 = vpop.f32.mrf.mxu0
    %v691 = vadd.f32 %v576, %v690
    %v692 = vpop.f32.mrf.mxu0
    %v693 = vadd.f32 %v576, %v692
    %694 = vmatmul.bf16.gmra.mxu0 %v554
    %v695 = vpop.f32.mrf.mxu0
    %v696 = vadd.f32 %v576, %v695
    %v697 = vpop.f32.mrf.mxu0
    %v698 = vadd.f32 %v576, %v697
    %699 = vmatmul.bf16.gmra.mxu0 %v555
    %v700 = vpop.f32.mrf.mxu0
    %v701 = vadd.f32 %v576, %v700
    %v702 = vpop.f32.mrf.mxu0
    %v703 = vadd.f32 %v576, %v702
    %704 = vmatmul.bf16.gmra.mxu0 %v556
    %v705 = vpop.f32.mrf.mxu0
    %v706 = vadd.f32 %v576, %v705
    %v707 = vpop.f32.mrf.mxu0
    %v708 = vadd.f32 %v576, %v707
    %709 = vmatmul.bf16.gmra.mxu0 %v557
    %v710 = vpop.f32.mrf.mxu0
    %v711 = vadd.f32 %v576, %v710
    %v712 = vpop.f32.mrf.mxu0
    %v713 = vadd.f32 %v576, %v712
    %714 = vdwg.mxu0
    %v715 = vpack.c.bf16 %v636, %v636
    %v716 = vpack.c.bf16 %v638, %v638
    %v717 = vpack.c.bf16 %v641, %v641
    %v718 = vpack.c.bf16 %v643, %v643
    %v719 = vpack.c.bf16 %v646, %v646
    %v720 = vpack.c.bf16 %v648, %v648
    %v721 = vpack.c.bf16 %v651, %v651
    %v722 = vpack.c.bf16 %v653, %v653
    %v723 = vpack.c.bf16 %v656, %v656
    %v724 = vpack.c.bf16 %v658, %v658
    %v725 = vpack.c.bf16 %v661, %v661
    %v726 = vpack.c.bf16 %v663, %v663
    %v727 = vpack.c.bf16 %v666, %v666
    %v728 = vpack.c.bf16 %v668, %v668
    %v729 = vpack.c.bf16 %v671, %v671
    %v730 = vpack.c.bf16 %v673, %v673
    %v731 = vpack.c.bf16 %v676, %v676
    %v732 = vpack.c.bf16 %v678, %v678
    %v733 = vpack.c.bf16 %v681, %v681
    %v734 = vpack.c.bf16 %v683, %v683
    %v735 = vpack.c.bf16 %v686, %v686
    %v736 = vpack.c.bf16 %v688, %v688
    %v737 = vpack.c.bf16 %v691, %v691
    %v738 = vpack.c.bf16 %v693, %v693
    %v739 = vpack.c.bf16 %v696, %v696
    %v740 = vpack.c.bf16 %v698, %v698
    %v741 = vpack.c.bf16 %v701, %v701
    %v742 = vpack.c.bf16 %v703, %v703
    %v743 = vpack.c.bf16 %v706, %v706
    %v744 = vpack.c.bf16 %v708, %v708
    %v745 = vpack.c.bf16 %v711, %v711
    %v746 = vpack.c.bf16 %v713, %v713
    %v747 = vunpack.c.l.bf16 %v715
    %v748 = vunpack.c.l.bf16 %v716
    %v749 = vunpack.c.l.bf16 %v717
    %v750 = vunpack.c.l.bf16 %v718
    %v751 = vunpack.c.l.bf16 %v719
    %v752 = vunpack.c.l.bf16 %v720
    %v753 = vunpack.c.l.bf16 %v721
    %v754 = vunpack.c.l.bf16 %v722
    %v755 = vunpack.c.l.bf16 %v723
    %v756 = vunpack.c.l.bf16 %v724
    %v757 = vunpack.c.l.bf16 %v725
    %v758 = vunpack.c.l.bf16 %v726
    %v759 = vunpack.c.l.bf16 %v727
    %v760 = vunpack.c.l.bf16 %v728
    %v761 = vunpack.c.l.bf16 %v729
    %v762 = vunpack.c.l.bf16 %v730
    %v763 = vunpack.c.l.bf16 %v731
    %v764 = vunpack.c.l.bf16 %v732
    %v765 = vunpack.c.l.bf16 %v733
    %v766 = vunpack.c.l.bf16 %v734
    %v767 = vunpack.c.l.bf16 %v735
    %v768 = vunpack.c.l.bf16 %v736
    %v769 = vunpack.c.l.bf16 %v737
    %v770 = vunpack.c.l.bf16 %v738
    %v771 = vunpack.c.l.bf16 %v739
    %v772 = vunpack.c.l.bf16 %v740
    %v773 = vunpack.c.l.bf16 %v741
    %v774 = vunpack.c.l.bf16 %v742
    %v775 = vunpack.c.l.bf16 %v743
    %v776 = vunpack.c.l.bf16 %v744
    %v777 = vunpack.c.l.bf16 %v745
    %v778 = vunpack.c.l.bf16 %v746
    %v779 = vmax.f32 %v747, 0.0
    %v780 = vmax.f32 %v748, 0.0
    %v781 = vmax.f32 %v749, 0.0
    %v782 = vmax.f32 %v750, 0.0
    %v783 = vmax.f32 %v751, 0.0
    %v784 = vmax.f32 %v752, 0.0
    %v785 = vmax.f32 %v753, 0.0
    %v786 = vmax.f32 %v754, 0.0
    %v787 = vmax.f32 %v755, 0.0
    %v788 = vmax.f32 %v756, 0.0
    %v789 = vmax.f32 %v757, 0.0
    %v790 = vmax.f32 %v758, 0.0
    %v791 = vmax.f32 %v759, 0.0
    %v792 = vmax.f32 %v760, 0.0
    %v793 = vmax.f32 %v761, 0.0
    %v794 = vmax.f32 %v762, 0.0
    %v795 = vmax.f32 %v763, 0.0
    %v796 = vmax.f32 %v764, 0.0
    %v797 = vmax.f32 %v765, 0.0
    %v798 = vmax.f32 %v766, 0.0
    %v799 = vmax.f32 %v767, 0.0
    %v800 = vmax.f32 %v768, 0.0
    %v801 = vmax.f32 %v769, 0.0
    %v802 = vmax.f32 %v770, 0.0
    %v803 = vmax.f32 %v771, 0.0
    %v804 = vmax.f32 %v772, 0.0
    %v805 = vmax.f32 %v773, 0.0
    %v806 = vmax.f32 %v774, 0.0
    %v807 = vmax.f32 %v775, 0.0
    %v808 = vmax.f32 %v776, 0.0
    %v809 = vmax.f32 %v777, 0.0
    %v810 = vmax.f32 %v778, 0.0
    %v811 = vpack.c.bf16 %v780, %v779
    %v812 = vpack.c.bf16 %v782, %v781
    %v813 = vpack.c.bf16 %v784, %v783
    %v814 = vpack.c.bf16 %v786, %v785
    %v815 = vpack.c.bf16 %v788, %v787
    %v816 = vpack.c.bf16 %v790, %v789
    %v817 = vpack.c.bf16 %v792, %v791
    %v818 = vpack.c.bf16 %v794, %v793
    %v819 = vpack.c.bf16 %v796, %v795
    %v820 = vpack.c.bf16 %v798, %v797
    %v821 = vpack.c.bf16 %v800, %v799
    %v822 = vpack.c.bf16 %v802, %v801
    %v823 = vpack.c.bf16 %v804, %v803
    %v824 = vpack.c.bf16 %v806, %v805
    %v825 = vpack.c.bf16 %v808, %v807
    %v826 = vpack.c.bf16 %v810, %v809
    %v827 = vld [vmem:[%s6] sm:$0xf]
    %v828 = vld [vmem:[%s6 + $0x4] sm:$0xf]
    %v829 = vld [vmem:[%s6 + $0x8] sm:$0xf]
    %v830 = vld [vmem:[%s6 + $0xc] sm:$0xf]
    %v831 = vld [vmem:[%s6 + $0x10] sm:$0xf]
    %v832 = vld [vmem:[%s6 + $0x14] sm:$0xf]
    %v833 = vld [vmem:[%s6 + $0x18] sm:$0xf]
    %v834 = vld [vmem:[%s6 + $0x1c] sm:$0xf]
    %v835 = vld [vmem:[%s6 + $0x20] sm:$0xf]
    %v836 = vld [vmem:[%s6 + $0x24] sm:$0xf]
    %v837 = vld [vmem:[%s6 + $0x28] sm:$0xf]
    %v838 = vld [vmem:[%s6 + $0x2c] sm:$0xf]
    %v839 = vld [vmem:[%s6 + $0x30] sm:$0xf]
    %v840 = vld [vmem:[%s6 + $0x34] sm:$0xf]
    %v841 = vld [vmem:[%s6 + $0x38] sm:$0xf]
    %v842 = vld [vmem:[%s6 + $0x3c] sm:$0xf]
    %v843 = vld [vmem:[%s7] sm:$0x1]
    %v845 = vperm.slane %v843, 0
    %v863 = vunpack.c.l.b16 %v827
    %v864 = vunpack.c.l.b16 %v828
    %v865 = vunpack.c.l.b16 %v829
    %v866 = vunpack.c.l.b16 %v830
    %v867 = vunpack.c.l.b16 %v831
    %v868 = vunpack.c.l.b16 %v832
    %v869 = vunpack.c.l.b16 %v833
    %v870 = vunpack.c.l.b16 %v834
    %v871 = vunpack.c.l.b16 %v835
    %v872 = vunpack.c.l.b16 %v836
    %v873 = vunpack.c.l.b16 %v837
    %v874 = vunpack.c.l.b16 %v838
    %v875 = vunpack.c.l.b16 %v839
    %v876 = vunpack.c.l.b16 %v840
    %v877 = vunpack.c.l.b16 %v841
    %v878 = vunpack.c.l.b16 %v842
    %v879 = vpack.c.b16 %v864, %v863
    %v880 = vpack.c.b16 %v866, %v865
    %v881 = vpack.c.b16 %v868, %v867
    %v882 = vpack.c.b16 %v870, %v869
    %v883 = vpack.c.b16 %v872, %v871
    %v884 = vpack.c.b16 %v874, %v873
    %v885 = vpack.c.b16 %v876, %v875
    %v886 = vpack.c.b16 %v878, %v877
    %895 = vmatpush.bf16.msra.mxu0 %v886
    %896 = vmatpush.bf16.msra.mxu0 %v885
    %897 = vmatpush.bf16.msra.mxu0 %v884
    %898 = vmatpush.bf16.msra.mxu0 %v883
    %899 = vmatpush.bf16.msra.mxu0 %v882
    %900 = vmatpush.bf16.msra.mxu0 %v881
    %901 = vmatpush.bf16.msra.mxu0 %v880
    %902 = vmatpush.bf16.msra.mxu0 %v879
    %903 = vmatmul.bf16.gmra.mxu0 %v811
    %v904 = vpop.f32.mrf.mxu0
    %v905 = vadd.f32 %v845, %v904
    %v906 = vpop.f32.mrf.mxu0
    %v907 = vadd.f32 %v845, %v906
    %908 = vmatmul.bf16.gmra.mxu0 %v812
    %v909 = vpop.f32.mrf.mxu0
    %v910 = vadd.f32 %v845, %v909
    %v911 = vpop.f32.mrf.mxu0
    %v912 = vadd.f32 %v845, %v911
    %913 = vmatmul.bf16.gmra.mxu0 %v813
    %v914 = vpop.f32.mrf.mxu0
    %v915 = vadd.f32 %v845, %v914
    %v916 = vpop.f32.mrf.mxu0
    %v917 = vadd.f32 %v845, %v916
    %918 = vmatmul.bf16.gmra.mxu0 %v814
    %v919 = vpop.f32.mrf.mxu0
    %v920 = vadd.f32 %v845, %v919
    %v921 = vpop.f32.mrf.mxu0
    %v922 = vadd.f32 %v845, %v921
    %923 = vmatmul.bf16.gmra.mxu0 %v815
    %v924 = vpop.f32.mrf.mxu0
    %v925 = vadd.f32 %v845, %v924
    %v926 = vpop.f32.mrf.mxu0
    %v927 = vadd.f32 %v845, %v926
    %928 = vmatmul.bf16.gmra.mxu0 %v816
    %v929 = vpop.f32.mrf.mxu0
    %v930 = vadd.f32 %v845, %v929
    %v931 = vpop.f32.mrf.mxu0
    %v932 = vadd.f32 %v845, %v931
    %933 = vmatmul.bf16.gmra.mxu0 %v817
    %v934 = vpop.f32.mrf.mxu0
    %v935 = vadd.f32 %v845, %v934
    %v936 = vpop.f32.mrf.mxu0
    %v937 = vadd.f32 %v845, %v936
    %938 = vmatmul.bf16.gmra.mxu0 %v818
    %v939 = vpop.f32.mrf.mxu0
    %v940 = vadd.f32 %v845, %v939
    %v941 = vpop.f32.mrf.mxu0
    %v942 = vadd.f32 %v845, %v941
    %943 = vmatmul.bf16.gmra.mxu0 %v819
    %v944 = vpop.f32.mrf.mxu0
    %v945 = vadd.f32 %v845, %v944
    %v946 = vpop.f32.mrf.mxu0
    %v947 = vadd.f32 %v845, %v946
    %948 = vmatmul.bf16.gmra.mxu0 %v820
    %v949 = vpop.f32.mrf.mxu0
    %v950 = vadd.f32 %v845, %v949
    %v951 = vpop.f32.mrf.mxu0
    %v952 = vadd.f32 %v845, %v951
    %953 = vmatmul.bf16.gmra.mxu0 %v821
    %v954 = vpop.f32.mrf.mxu0
    %v955 = vadd.f32 %v845, %v954
    %v956 = vpop.f32.mrf.mxu0
    %v957 = vadd.f32 %v845, %v956
    %958 = vmatmul.bf16.gmra.mxu0 %v822
    %v959 = vpop.f32.mrf.mxu0
    %v960 = vadd.f32 %v845, %v959
    %v961 = vpop.f32.mrf.mxu0
    %v962 = vadd.f32 %v845, %v961
    %963 = vmatmul.bf16.gmra.mxu0 %v823
    %v964 = vpop.f32.mrf.mxu0
    %v965 = vadd.f32 %v845, %v964
    %v966 = vpop.f32.mrf.mxu0
    %v967 = vadd.f32 %v845, %v966
    %968 = vmatmul.bf16.gmra.mxu0 %v824
    %v969 = vpop.f32.mrf.mxu0
    %v970 = vadd.f32 %v845, %v969
    %v971 = vpop.f32.mrf.mxu0
    %v972 = vadd.f32 %v845, %v971
    %973 = vmatmul.bf16.gmra.mxu0 %v825
    %v974 = vpop.f32.mrf.mxu0
    %v975 = vadd.f32 %v845, %v974
    %v976 = vpop.f32.mrf.mxu0
    %v977 = vadd.f32 %v845, %v976
    %978 = vmatmul.bf16.gmra.mxu0 %v826
    %v979 = vpop.f32.mrf.mxu0
    %v980 = vadd.f32 %v845, %v979
    %v981 = vpop.f32.mrf.mxu0
    %v982 = vadd.f32 %v845, %v981
    %983 = vdwg.mxu0
    %984 = vst [vmem:[#allocation2] sm:$0xff] %v905
    %985 = vst [vmem:[#allocation2 + $0x8] sm:$0xff] %v907
    %986 = vst [vmem:[#allocation2 + $0x10] sm:$0xff] %v910
    %987 = vst [vmem:[#allocation2 + $0x18] sm:$0xff] %v912
    %988 = vst [vmem:[#allocation2 + $0x20] sm:$0xff] %v915
    %989 = vst [vmem:[#allocation2 + $0x28] sm:$0xff] %v917
    %990 = vst [vmem:[#allocation2 + $0x30] sm:$0xff] %v920
    %991 = vst [vmem:[#allocation2 + $0x38] sm:$0xff] %v922
    %992 = vst [vmem:[#allocation2 + $0x40] sm:$0xff] %v925
    %993 = vst [vmem:[#allocation2 + $0x48] sm:$0xff] %v927
    %994 = vst [vmem:[#allocation2 + $0x50] sm:$0xff] %v930
    %995 = vst [vmem:[#allocation2 + $0x58] sm:$0xff] %v932
    %996 = vst [vmem:[#allocation2 + $0x60] sm:$0xff] %v935
    %997 = vst [vmem:[#allocation2 + $0x68] sm:$0xff] %v937
    %998 = vst [vmem:[#allocation2 + $0x70] sm:$0xff] %v940
    %999 = vst [vmem:[#allocation2 + $0x78] sm:$0xff] %v942
    %1000 = vst [vmem:[#allocation2 + $0x80] sm:$0xff] %v945
    %1001 = vst [vmem:[#allocation2 + $0x88] sm:$0xff] %v947
    %1002 = vst [vmem:[#allocation2 + $0x90] sm:$0xff] %v950
    %1003 = vst [vmem:[#allocation2 + $0x98] sm:$0xff] %v952
    %1004 = vst [vmem:[#allocation2 + $0xa0] sm:$0xff] %v955
    %1005 = vst [vmem:[#allocation2 + $0xa8] sm:$0xff] %v957
    %1006 = vst [vmem:[#allocation2 + $0xb0] sm:$0xff] %v960
    %1007 = vst [vmem:[#allocation2 + $0xb8] sm:$0xff] %v962
    %1008 = vst [vmem:[#allocation2 + $0xc0] sm:$0xff] %v965
    %1009 = vst [vmem:[#allocation2 + $0xc8] sm:$0xff] %v967
    %1010 = vst [vmem:[#allocation2 + $0xd0] sm:$0xff] %v970
    %1011 = vst [vmem:[#allocation2 + $0xd8] sm:$0xff] %v972
    %1012 = vst [vmem:[#allocation2 + $0xe0] sm:$0xff] %v975
    %1013 = vst [vmem:[#allocation2 + $0xe8] sm:$0xff] %v977
    %1014 = vst [vmem:[#allocation2 + $0xf0] sm:$0xff] %v980
    %1015 = vst [vmem:[#allocation2 + $0xf8] sm:$0xff] %v982
    // Predicated region
    $region34: #{tpu_custom_call.1} parent=1 // pred_check
      _
    $region35: #{tpu_custom_call.1} parent=1 // pred_check_branch
      %1017 = sbr.rel (0) target = $region37
    $region36: #{tpu_custom_call.1} parent=1 // pred_region
      %1019 = vsyncadd [#allocation3], 0
      %s1020 = sshll.u32 [#allocation2], 4
      %s1021 = int_to_ptr.vmem [resolvable:$true] %s1020
      %s1022 = sshll.u32 %s8, 4
      %s1023 = int_to_ptr.hbm [resolvable:$true] %s1022
      %1028 = dma.vmem_to_hbm [thread:$0]  %s1021, 4096, %s1023, [#allocation3], 128, 128, 8
    $region37: #{tpu_custom_call.1} parent=1 // pred_fallthru
      _
    // Predicated region
    $region38: #{tpu_custom_call.1} parent=1 // pred_check
      _
    $region39: #{tpu_custom_call.1} parent=1 // pred_check_branch
      %1030 = sbr.rel (0) target = $region41
    $region40: #{tpu_custom_call.1} parent=1 // pred_region
      %1032 = dma.done [#allocation3], 4096
    $region41: #{tpu_custom_call.1} parent=1 // pred_fallthru
      _
    %1033 = vsyncpa [#allocation3], 1

</llo_original>
